<compile_context>
chip_gen: v6e
topology: v6e:2x2x1
jax: 0.10.0
libtpu: 0.0.40
codegen_flags: <defaults>
</compile_context>

<pallas_src>
import functools

import jax
import jax.numpy as jnp
from jax.experimental import pallas as pl
from jax.experimental.pallas import tpu as pltpu


# ----------------------------- kernel -----------------------------------------

def _layernorm(t, g, b, eps=1e-5):
    mu = jnp.mean(t, axis=-1, keepdims=True)
    var = jnp.mean((t - mu) ** 2, axis=-1, keepdims=True)
    return (t - mu) * jax.lax.rsqrt(var + eps) * g + b


def encoder_layer_kernel(x_ref, cos_ref, sin_ref,
                         wq_ref, bq_ref, wqr_ref, bqr_ref,
                         wk_ref, bk_ref, wkr_ref, bkr_ref,
                         wv_ref, bv_ref,
                         wo_ref, bo_ref,
                         ln1g_ref, ln1b_ref,
                         w1_ref, b1_ref, w2_ref, b2_ref, wd_ref, bd_ref,
                         ln2g_ref, ln2b_ref,
                         o_ref, *, n_heads, d_head, batch, seq):
    f32, bf16 = jnp.float32, jnp.bfloat16
    rows, H = x_ref.shape                       # rows = batch * seq

    xf = x_ref[...]                             # (rows, H) f32 residual stream
    xb = xf.astype(bf16)
    cos = cos_ref[...]                          # (rows, H) f32, tiled per head/batch
    sin = sin_ref[...]

    # --- QKV projections: bf16 operands, f32 accumulation ----------------------
    q  = jnp.dot(xb, wq_ref[...],  preferred_element_type=f32) + bq_ref[...]
    qr = jnp.dot(xb, wqr_ref[...], preferred_element_type=f32) + bqr_ref[...]
    k  = jnp.dot(xb, wk_ref[...],  preferred_element_type=f32) + bk_ref[...]
    kr = jnp.dot(xb, wkr_ref[...], preferred_element_type=f32) + bkr_ref[...]
    v  = jnp.dot(xb, wv_ref[...],  preferred_element_type=f32) + bv_ref[...]

    # rotary (hoisted): wqr = wq @ R already encodes rotate_half, so this is a dense FMA
    q = q * cos + qr * sin
    k = k * cos + kr * sin

    # head-major layout back to (B, L, H) for batch-separated attention
    q3 = q.reshape(batch, seq, H).astype(bf16)
    k3 = k.reshape(batch, seq, H).astype(bf16)
    v3 = v.reshape(batch, seq, H).astype(bf16)

    scale = 1.0 / (d_head ** 0.5)
    acc = jnp.zeros((rows, H), f32)             # attention output, already out-projected
    for h in range(n_heads):                    # static unroll over heads
        lo = h * d_head
        qh = q3[:, :, lo:lo + d_head]           # (B, L, d)
        kh = k3[:, :, lo:lo + d_head]
        vh = v3[:, :, lo:lo + d_head]
        s = jnp.einsum('bqd,bkd->bqk', qh, kh,
                       preferred_element_type=f32) * scale          # (B, L, L) f32
        s = s - jnp.max(s, axis=-1, keepdims=True)
        p = jnp.exp(s)
        p = p * pl.reciprocal(jnp.sum(p, axis=-1, keepdims=True), approx=True)
        ctx = jnp.einsum('bqk,bkd->bqd', p.astype(bf16), vh,
                         preferred_element_type=f32)                 # (B, L, d) f32
        # accumulate straight through this head's slice of the output projection
        acc = acc + jnp.dot(ctx.reshape(rows, d_head).astype(bf16), wo_ref[h],
                            preferred_element_type=f32)
    attn_out = acc + bo_ref[...]

    h1 = _layernorm(xf + attn_out, ln1g_ref[...], ln1b_ref[...])     # f32
    h1b = h1.astype(bf16)

    # --- SwiGLU-style FFN -------------------------------------------------------
    gate = jnp.dot(h1b, w1_ref[...], preferred_element_type=f32) + b1_ref[...]
    gate = gate * jax.nn.sigmoid(gate)                               # SiLU in f32
    val = jnp.dot(h1b, w2_ref[...], preferred_element_type=f32) + b2_ref[...]
    m = jnp.dot((gate * val).astype(bf16), wd_ref[...],
                preferred_element_type=f32) + bd_ref[...]

    h2 = _layernorm(h1 + m, ln2g_ref[...], ln2b_ref[...])
    o_ref[...] = h2.astype(o_ref.dtype)


# ----------------------------- wrapper -----------------------------------------

def _full_spec(shape):
    zeros = (0,) * len(shape)
    return pl.BlockSpec(shape, lambda i, z=zeros: z)


def _rotary_tables(seq, d_head, n_heads, batch):
    f32 = jnp.float32
    inv_freq = 1.0 / (10000.0 ** (jnp.arange(0, d_head, 2, dtype=f32) / d_head))
    freqs = jnp.outer(jnp.arange(seq, dtype=f32), inv_freq)          # (L, d_head/2)
    emb = jnp.concatenate([freqs, freqs], axis=-1)                   # (L, d_head)
    cos = jnp.tile(jnp.tile(jnp.cos(emb), (1, n_heads)), (batch, 1)) # (B*L, H)
    sin = jnp.tile(jnp.tile(jnp.sin(emb), (1, n_heads)), (batch, 1))
    return cos, sin


@functools.partial(jax.jit, static_argnames=("n_heads",))
def encoder_layer_forward(x, params, *, n_heads):
    B, L, H = x.shape
    d_head = H // n_heads
    half = d_head // 2
    rows = B * L
    f32, bf16 = jnp.float32, jnp.bfloat16

    cos, sin = _rotary_tables(L, d_head, n_heads, B)

    # rotate_half as a signed block-diagonal permutation matrix R (H, H)
    r_blk = jnp.zeros((d_head, d_head), f32)
    r_blk = r_blk.at[jnp.arange(half) + half, jnp.arange(half)].set(-1.0)
    r_blk = r_blk.at[jnp.arange(half), jnp.arange(half) + half].set(1.0)
    R = jnp.kron(jnp.eye(n_heads, dtype=f32), r_blk)

    wq, bq = params["wq"], params["bq"]
    wk, bk = params["wk"], params["bk"]
    wqr, bqr = wq @ R, bq @ R                # pre-rotated q/k projections
    wkr, bkr = wk @ R, bk @ R
    wo3 = params["wo"].reshape(n_heads, d_head, H)   # per-head out-projection slices

    args = (
        x.reshape(rows, H), cos, sin,
        wq.astype(bf16), bq, wqr.astype(bf16), bqr,
        wk.astype(bf16), bk, wkr.astype(bf16), bkr,
        params["wv"].astype(bf16), params["bv"],
        wo3.astype(bf16), params["bo"],
        params["ln1_g"], params["ln1_b"],
        params["w1"].astype(bf16), params["b1"],
        params["w2"].astype(bf16), params["b2"],
        params["wd"].astype(bf16), params["bd"],
        params["ln2_g"], params["ln2_b"],
    )

    kernel = functools.partial(encoder_layer_kernel,
                               n_heads=n_heads, d_head=d_head, batch=B, seq=L)

    out2 = pl.pallas_call(
        kernel,
        out_shape=jax.ShapeDtypeStruct((rows, H), jnp.float32),
        grid=(1,),                                   # whole batch in one pipelined step
        in_specs=[_full_spec(a.shape) for a in args],
        out_specs=_full_spec((rows, H)),
        compiler_params=pltpu.CompilerParams(dimension_semantics=("arbitrary",)),
    )(*args)
    return out2.reshape(B, L, H)


# ----------------------------- pure-JAX reference -------------------------------

def encoder_layer_reference(x, params, *, n_heads):
    B, L, H = x.shape
    d_head = H // n_heads
    f32 = jnp.float32

    inv_freq = 1.0 / (10000.0 ** (jnp.arange(0, d_head, 2, dtype=f32) / d_head))
    freqs = jnp.outer(jnp.arange(L, dtype=f32), inv_freq)
    emb = jnp.concatenate([freqs, freqs], axis=-1)            # (L, d_head)
    cos, sin = jnp.cos(emb), jnp.sin(emb)

    def rotate_half(t):
        t1, t2 = jnp.split(t, 2, axis=-1)
        return jnp.concatenate([-t2, t1], axis=-1)

    q = x @ params["wq"] + params["bq"]
    k = x @ params["wk"] + params["bk"]
    v = x @ params["wv"] + params["bv"]

    q4 = q.reshape(B, L, n_heads, d_head)
    k4 = k.reshape(B, L, n_heads, d_head)
    c = cos[None, :, None, :]
    s = sin[None, :, None, :]
    q4 = q4 * c + rotate_half(q4) * s
    k4 = k4 * c + rotate_half(k4) * s

    qh = q4.transpose(0, 2, 1, 3)                             # (B, h, L, d)
    kh = k4.transpose(0, 2, 1, 3)
    vh = v.reshape(B, L, n_heads, d_head).transpose(0, 2, 1, 3)

    scores = jnp.einsum('bhqd,bhkd->bhqk', qh, kh) / jnp.sqrt(jnp.float32(d_head))
    p = jax.nn.softmax(scores, axis=-1)
    ctx = jnp.einsum('bhqk,bhkd->bhqd', p, vh).transpose(0, 2, 1, 3).reshape(B, L, H)
    attn = ctx @ params["wo"] + params["bo"]

    def layernorm(t, g, b, eps=1e-5):
        mu = jnp.mean(t, -1, keepdims=True)
        var = jnp.mean((t - mu) ** 2, -1, keepdims=True)
        return (t - mu) / jnp.sqrt(var + eps) * g + b

    h1 = layernorm(x + attn, params["ln1_g"], params["ln1_b"])
    gate = jax.nn.silu(h1 @ params["w1"] + params["b1"])
    val = h1 @ params["w2"] + params["b2"]
    m = (gate * val) @ params["wd"] + params["bd"]
    return layernorm(h1 + m, params["ln2_g"], params["ln2_b"])


# ----------------------------- parameters ---------------------------------------

def _spectral_normalize(w, n_iters=100):
    # power iteration on W (like torch.nn.utils.spectral_norm, bias untouched)
    v = jnp.ones((w.shape[1],), w.dtype) / jnp.sqrt(jnp.float32(w.shape[1]))

    def body(_, v):
        u = w @ v
        u = u / (jnp.linalg.norm(u) + 1e-12)
        v = w.T @ u
        v = v / (jnp.linalg.norm(v) + 1e-12)
        return v

    v = jax.lax.fori_loop(0, n_iters, body, v)
    sigma = jnp.linalg.norm(w @ v)
    return w / sigma


def _linear(key, fan_in, fan_out, spectral=True):
    kw, kb = jax.random.split(key)
    bound = 1.0 / (fan_in ** 0.5)
    w = jax.random.uniform(kw, (fan_in, fan_out), jnp.float32, -bound, bound)
    b = jax.random.uniform(kb, (1, fan_out), jnp.float32, -bound, bound)
    if spectral:
        w = _spectral_normalize(w)
    return w, b


def init_params(key, hidden, intermediate):
    lk = jax.random.split(key, 7)
    wq, bq = _linear(lk[0], hidden, hidden)
    wk, bk = _linear(lk[1], hidden, hidden)
    wv, bv = _linear(lk[2], hidden, hidden)
    wo, bo = _linear(lk[3], hidden, hidden)
    w1, b1 = _linear(lk[4], hidden, intermediate)
    w2, b2 = _linear(lk[5], hidden, intermediate)
    wd, bd = _linear(lk[6], intermediate, hidden)
    ones = jnp.ones((1, hidden), jnp.float32)
    zeros = jnp.zeros((1, hidden), jnp.float32)
    return dict(wq=wq, bq=bq, wk=wk, bk=bk, wv=wv, bv=bv, wo=wo, bo=bo,
                w1=w1, b1=b1, w2=w2, b2=b2, wd=wd, bd=bd,
                ln1_g=ones, ln1_b=zeros, ln2_g=ones, ln2_b=zeros)


# ----------------------------- main ----------------------------------------------

if __name__ == "__main__":
    B, L = 2, 8
    hidden, n_heads, intermediate = 32, 4, 64     # dropout = 0.0 (eval)

    key = jax.random.PRNGKey(0)
    kx, kp = jax.random.split(key)
    x = jax.random.normal(kx, (B, L, hidden), jnp.float32)
    params = init_params(kp, hidden, intermediate)

    out = jax.block_until_ready(encoder_layer_forward(x, params, n_heads=n_heads))
    ref = jax.block_until_ready(encoder_layer_reference(x, params, n_heads=n_heads))

    assert out.shape == (B, L, hidden)
    assert bool(jnp.all(jnp.isfinite(out)))
    max_err = float(jnp.max(jnp.abs(out - ref)))
    assert max_err < 0.2, f"kernel vs reference mismatch: max abs err {max_err}"
    print("KERNEL_OK")
</pallas_src>

<mosaic_0001>
module attributes {stable_mosaic.version = 11 : i64} {
  func.func @encoder_layer_kernel(%arg0: i32, %arg1: memref<16x32xf32, #tpu.memory_space<vmem>>, %arg2: memref<16x32xf32, #tpu.memory_space<vmem>>, %arg3: memref<16x32xf32, #tpu.memory_space<vmem>>, %arg4: memref<32x32xbf16, #tpu.memory_space<vmem>>, %arg5: memref<1x32xf32, #tpu.memory_space<vmem>>, %arg6: memref<32x32xbf16, #tpu.memory_space<vmem>>, %arg7: memref<1x32xf32, #tpu.memory_space<vmem>>, %arg8: memref<32x32xbf16, #tpu.memory_space<vmem>>, %arg9: memref<1x32xf32, #tpu.memory_space<vmem>>, %arg10: memref<32x32xbf16, #tpu.memory_space<vmem>>, %arg11: memref<1x32xf32, #tpu.memory_space<vmem>>, %arg12: memref<32x32xbf16, #tpu.memory_space<vmem>>, %arg13: memref<1x32xf32, #tpu.memory_space<vmem>>, %arg14: memref<4x8x32xbf16, #tpu.memory_space<vmem>>, %arg15: memref<1x32xf32, #tpu.memory_space<vmem>>, %arg16: memref<1x32xf32, #tpu.memory_space<vmem>>, %arg17: memref<1x32xf32, #tpu.memory_space<vmem>>, %arg18: memref<32x64xbf16, #tpu.memory_space<vmem>>, %arg19: memref<1x64xf32, #tpu.memory_space<vmem>>, %arg20: memref<32x64xbf16, #tpu.memory_space<vmem>>, %arg21: memref<1x64xf32, #tpu.memory_space<vmem>>, %arg22: memref<64x32xbf16, #tpu.memory_space<vmem>>, %arg23: memref<1x32xf32, #tpu.memory_space<vmem>>, %arg24: memref<1x32xf32, #tpu.memory_space<vmem>>, %arg25: memref<1x32xf32, #tpu.memory_space<vmem>>, %arg26: memref<16x32xf32, #tpu.memory_space<vmem>>) attributes {dimension_semantics = [#tpu.dimension_semantics<arbitrary>], iteration_bounds = array<i64: 1>, scalar_prefetch = 0 : i64, scratch_operands = 0 : i64, tpu.core_type = #tpu.core_type<tc>, window_params = [{pipeline_mode = #tpu.pipeline_mode<synchronous>, transform_indices = @transform_0, window_bounds = array<i64: 16, 32>}, {pipeline_mode = #tpu.pipeline_mode<synchronous>, transform_indices = @transform_1, window_bounds = array<i64: 16, 32>}, {pipeline_mode = #tpu.pipeline_mode<synchronous>, transform_indices = @transform_2, window_bounds = array<i64: 16, 32>}, {pipeline_mode = #tpu.pipeline_mode<synchronous>, transform_indices = @transform_3, window_bounds = array<i64: 32, 32>}, {pipeline_mode = #tpu.pipeline_mode<synchronous>, transform_indices = @transform_4, window_bounds = array<i64: 1, 32>}, {pipeline_mode = #tpu.pipeline_mode<synchronous>, transform_indices = @transform_5, window_bounds = array<i64: 32, 32>}, {pipeline_mode = #tpu.pipeline_mode<synchronous>, transform_indices = @transform_6, window_bounds = array<i64: 1, 32>}, {pipeline_mode = #tpu.pipeline_mode<synchronous>, transform_indices = @transform_7, window_bounds = array<i64: 32, 32>}, {pipeline_mode = #tpu.pipeline_mode<synchronous>, transform_indices = @transform_8, window_bounds = array<i64: 1, 32>}, {pipeline_mode = #tpu.pipeline_mode<synchronous>, transform_indices = @transform_9, window_bounds = array<i64: 32, 32>}, {pipeline_mode = #tpu.pipeline_mode<synchronous>, transform_indices = @transform_10, window_bounds = array<i64: 1, 32>}, {pipeline_mode = #tpu.pipeline_mode<synchronous>, transform_indices = @transform_11, window_bounds = array<i64: 32, 32>}, {pipeline_mode = #tpu.pipeline_mode<synchronous>, transform_indices = @transform_12, window_bounds = array<i64: 1, 32>}, {pipeline_mode = #tpu.pipeline_mode<synchronous>, transform_indices = @transform_13, window_bounds = array<i64: 4, 8, 32>}, {pipeline_mode = #tpu.pipeline_mode<synchronous>, transform_indices = @transform_14, window_bounds = array<i64: 1, 32>}, {pipeline_mode = #tpu.pipeline_mode<synchronous>, transform_indices = @transform_15, window_bounds = array<i64: 1, 32>}, {pipeline_mode = #tpu.pipeline_mode<synchronous>, transform_indices = @transform_16, window_bounds = array<i64: 1, 32>}, {pipeline_mode = #tpu.pipeline_mode<synchronous>, transform_indices = @transform_17, window_bounds = array<i64: 32, 64>}, {pipeline_mode = #tpu.pipeline_mode<synchronous>, transform_indices = @transform_18, window_bounds = array<i64: 1, 64>}, {pipeline_mode = #tpu.pipeline_mode<synchronous>, transform_indices = @transform_19, window_bounds = array<i64: 32, 64>}, {pipeline_mode = #tpu.pipeline_mode<synchronous>, transform_indices = @transform_20, window_bounds = array<i64: 1, 64>}, {pipeline_mode = #tpu.pipeline_mode<synchronous>, transform_indices = @transform_21, window_bounds = array<i64: 64, 32>}, {pipeline_mode = #tpu.pipeline_mode<synchronous>, transform_indices = @transform_22, window_bounds = array<i64: 1, 32>}, {pipeline_mode = #tpu.pipeline_mode<synchronous>, transform_indices = @transform_23, window_bounds = array<i64: 1, 32>}, {pipeline_mode = #tpu.pipeline_mode<synchronous>, transform_indices = @transform_24, window_bounds = array<i64: 1, 32>}, {pipeline_mode = #tpu.pipeline_mode<synchronous>, transform_indices = @transform_25, window_bounds = array<i64: 16, 32>}]} {
    %c0 = arith.constant 0 : index
    %c0_0 = arith.constant 0 : index
    %0 = vector.load %arg1[%c0, %c0_0] : memref<16x32xf32, #tpu.memory_space<vmem>>, vector<16x32xf32>
    %1 = arith.truncf %0 : vector<16x32xf32> to vector<16x32xbf16>
    %c0_1 = arith.constant 0 : index
    %c0_2 = arith.constant 0 : index
    %2 = vector.load %arg2[%c0_1, %c0_2] : memref<16x32xf32, #tpu.memory_space<vmem>>, vector<16x32xf32>
    %c0_3 = arith.constant 0 : index
    %c0_4 = arith.constant 0 : index
    %3 = vector.load %arg3[%c0_3, %c0_4] : memref<16x32xf32, #tpu.memory_space<vmem>>, vector<16x32xf32>
    %c0_5 = arith.constant 0 : index
    %c0_6 = arith.constant 0 : index
    %4 = vector.load %arg4[%c0_5, %c0_6] : memref<32x32xbf16, #tpu.memory_space<vmem>>, vector<32x32xbf16>
    %cst = arith.constant dense<0.000000e+00> : vector<16x32xf32>
    %5 = tpu.matmul %1, %4, %cst {dimension_numbers = #tpu.dot_dimension_numbers<[1], [0], [0], [1], [0, 0, 1, 1], [], []>} : vector<16x32xbf16>, vector<32x32xbf16>, vector<16x32xf32> -> vector<16x32xf32>
    %c0_7 = arith.constant 0 : index
    %c0_8 = arith.constant 0 : index
    %6 = vector.load %arg5[%c0_7, %c0_8] : memref<1x32xf32, #tpu.memory_space<vmem>>, vector<1x32xf32>
    %7 = vector.broadcast %6 : vector<1x32xf32> to vector<16x32xf32>
    %8 = arith.addf %5, %7 : vector<16x32xf32>
    %c0_9 = arith.constant 0 : index
    %c0_10 = arith.constant 0 : index
    %9 = vector.load %arg6[%c0_9, %c0_10] : memref<32x32xbf16, #tpu.memory_space<vmem>>, vector<32x32xbf16>
    %cst_11 = arith.constant dense<0.000000e+00> : vector<16x32xf32>
    %10 = tpu.matmul %1, %9, %cst_11 {dimension_numbers = #tpu.dot_dimension_numbers<[1], [0], [0], [1], [0, 0, 1, 1], [], []>} : vector<16x32xbf16>, vector<32x32xbf16>, vector<16x32xf32> -> vector<16x32xf32>
    %c0_12 = arith.constant 0 : index
    %c0_13 = arith.constant 0 : index
    %11 = vector.load %arg7[%c0_12, %c0_13] : memref<1x32xf32, #tpu.memory_space<vmem>>, vector<1x32xf32>
    %12 = vector.broadcast %11 : vector<1x32xf32> to vector<16x32xf32>
    %13 = arith.addf %10, %12 : vector<16x32xf32>
    %c0_14 = arith.constant 0 : index
    %c0_15 = arith.constant 0 : index
    %14 = vector.load %arg8[%c0_14, %c0_15] : memref<32x32xbf16, #tpu.memory_space<vmem>>, vector<32x32xbf16>
    %cst_16 = arith.constant dense<0.000000e+00> : vector<16x32xf32>
    %15 = tpu.matmul %1, %14, %cst_16 {dimension_numbers = #tpu.dot_dimension_numbers<[1], [0], [0], [1], [0, 0, 1, 1], [], []>} : vector<16x32xbf16>, vector<32x32xbf16>, vector<16x32xf32> -> vector<16x32xf32>
    %c0_17 = arith.constant 0 : index
    %c0_18 = arith.constant 0 : index
    %16 = vector.load %arg9[%c0_17, %c0_18] : memref<1x32xf32, #tpu.memory_space<vmem>>, vector<1x32xf32>
    %17 = vector.broadcast %16 : vector<1x32xf32> to vector<16x32xf32>
    %18 = arith.addf %15, %17 : vector<16x32xf32>
    %c0_19 = arith.constant 0 : index
    %c0_20 = arith.constant 0 : index
    %19 = vector.load %arg10[%c0_19, %c0_20] : memref<32x32xbf16, #tpu.memory_space<vmem>>, vector<32x32xbf16>
    %cst_21 = arith.constant dense<0.000000e+00> : vector<16x32xf32>
    %20 = tpu.matmul %1, %19, %cst_21 {dimension_numbers = #tpu.dot_dimension_numbers<[1], [0], [0], [1], [0, 0, 1, 1], [], []>} : vector<16x32xbf16>, vector<32x32xbf16>, vector<16x32xf32> -> vector<16x32xf32>
    %c0_22 = arith.constant 0 : index
    %c0_23 = arith.constant 0 : index
    %21 = vector.load %arg11[%c0_22, %c0_23] : memref<1x32xf32, #tpu.memory_space<vmem>>, vector<1x32xf32>
    %22 = vector.broadcast %21 : vector<1x32xf32> to vector<16x32xf32>
    %23 = arith.addf %20, %22 : vector<16x32xf32>
    %c0_24 = arith.constant 0 : index
    %c0_25 = arith.constant 0 : index
    %24 = vector.load %arg12[%c0_24, %c0_25] : memref<32x32xbf16, #tpu.memory_space<vmem>>, vector<32x32xbf16>
    %cst_26 = arith.constant dense<0.000000e+00> : vector<16x32xf32>
    %25 = tpu.matmul %1, %24, %cst_26 {dimension_numbers = #tpu.dot_dimension_numbers<[1], [0], [0], [1], [0, 0, 1, 1], [], []>} : vector<16x32xbf16>, vector<32x32xbf16>, vector<16x32xf32> -> vector<16x32xf32>
    %c0_27 = arith.constant 0 : index
    %c0_28 = arith.constant 0 : index
    %26 = vector.load %arg13[%c0_27, %c0_28] : memref<1x32xf32, #tpu.memory_space<vmem>>, vector<1x32xf32>
    %27 = vector.broadcast %26 : vector<1x32xf32> to vector<16x32xf32>
    %28 = arith.addf %25, %27 : vector<16x32xf32>
    %29 = arith.mulf %8, %2 : vector<16x32xf32>
    %30 = arith.mulf %13, %3 : vector<16x32xf32>
    %31 = arith.addf %29, %30 : vector<16x32xf32>
    %32 = arith.mulf %18, %2 : vector<16x32xf32>
    %33 = arith.mulf %23, %3 : vector<16x32xf32>
    %34 = arith.addf %32, %33 : vector<16x32xf32>
    %35 = vector.shape_cast %31 : vector<16x32xf32> to vector<2x8x32xf32>
    %36 = arith.truncf %35 : vector<2x8x32xf32> to vector<2x8x32xbf16>
    %37 = vector.shape_cast %34 : vector<16x32xf32> to vector<2x8x32xf32>
    %38 = arith.truncf %37 : vector<2x8x32xf32> to vector<2x8x32xbf16>
    %39 = vector.shape_cast %28 : vector<16x32xf32> to vector<2x8x32xf32>
    %40 = arith.truncf %39 : vector<2x8x32xf32> to vector<2x8x32xbf16>
    %cst_29 = arith.constant 0.000000e+00 : f32
    %41 = vector.broadcast %cst_29 : f32 to vector<16x32xf32>
    %42 = vector.extract_strided_slice %36 {offsets = [0, 0, 0], sizes = [2, 8, 8], strides = [1, 1, 1]} : vector<2x8x32xbf16> to vector<2x8x8xbf16>
    %43 = vector.extract_strided_slice %38 {offsets = [0, 0, 0], sizes = [2, 8, 8], strides = [1, 1, 1]} : vector<2x8x32xbf16> to vector<2x8x8xbf16>
    %44 = vector.extract_strided_slice %40 {offsets = [0, 0, 0], sizes = [2, 8, 8], strides = [1, 1, 1]} : vector<2x8x32xbf16> to vector<2x8x8xbf16>
    "tpu.trace_start"() <{level = 10 : i32, message = "bqd,bkd->bqk"}> : () -> ()
    %cst_30 = arith.constant dense<0.000000e+00> : vector<2x8x8xf32>
    %45 = tpu.matmul %42, %43, %cst_30 {dimension_numbers = #tpu.dot_dimension_numbers<[2], [2], [1], [1], [0, 0, 0, 1, 1, 1], [0], [0]>} : vector<2x8x8xbf16>, vector<2x8x8xbf16>, vector<2x8x8xf32> -> vector<2x8x8xf32>
    "tpu.trace_stop"() : () -> ()
    %cst_31 = arith.constant 0.353553385 : f32
    %46 = vector.broadcast %cst_31 : f32 to vector<2x8x8xf32>
    %47 = arith.mulf %45, %46 : vector<2x8x8xf32>
    %cst_32 = arith.constant dense<0xFF800000> : vector<2x8xf32>
    %48 = vector.multi_reduction <maximumf>, %47, %cst_32 [2] : vector<2x8x8xf32> to vector<2x8xf32>
    %49 = vector.shape_cast %48 : vector<2x8xf32> to vector<2x8x1xf32>
    %50 = vector.broadcast %49 : vector<2x8x1xf32> to vector<2x8x8xf32>
    %51 = arith.subf %47, %50 : vector<2x8x8xf32>
    %52 = math.exp %51 : vector<2x8x8xf32>
    %cst_33 = arith.constant dense<0.000000e+00> : vector<2x8xf32>
    %53 = vector.multi_reduction <add>, %52, %cst_33 [2] : vector<2x8x8xf32> to vector<2x8xf32>
    %54 = vector.shape_cast %53 : vector<2x8xf32> to vector<2x8x1xf32>
    %55 = tpu.reciprocal %54 {approx = true} : vector<2x8x1xf32> -> vector<2x8x1xf32>
    %56 = vector.broadcast %55 : vector<2x8x1xf32> to vector<2x8x8xf32>
    %57 = arith.mulf %52, %56 : vector<2x8x8xf32>
    %58 = arith.truncf %57 : vector<2x8x8xf32> to vector<2x8x8xbf16>
    "tpu.trace_start"() <{level = 10 : i32, message = "bqk,bkd->bqd"}> : () -> ()
    %cst_34 = arith.constant dense<0.000000e+00> : vector<2x8x8xf32>
    %59 = tpu.matmul %58, %44, %cst_34 {dimension_numbers = #tpu.dot_dimension_numbers<[2], [1], [1], [2], [0, 0, 0, 1, 1, 2], [0], [0]>} : vector<2x8x8xbf16>, vector<2x8x8xbf16>, vector<2x8x8xf32> -> vector<2x8x8xf32>
    "tpu.trace_stop"() : () -> ()
    %60 = vector.shape_cast %59 : vector<2x8x8xf32> to vector<16x8xf32>
    %61 = arith.truncf %60 : vector<16x8xf32> to vector<16x8xbf16>
    %c0_35 = arith.constant 0 : index
    %c0_36 = arith.constant 0 : index
    %c0_37 = arith.constant 0 : index
    %62 = vector.load %arg14[%c0_35, %c0_36, %c0_37] : memref<4x8x32xbf16, #tpu.memory_space<vmem>>, vector<1x8x32xbf16>
    %63 = vector.shape_cast %62 : vector<1x8x32xbf16> to vector<8x32xbf16>
    %cst_38 = arith.constant dense<0.000000e+00> : vector<16x32xf32>
    %64 = tpu.matmul %61, %63, %cst_38 {dimension_numbers = #tpu.dot_dimension_numbers<[1], [0], [0], [1], [0, 0, 1, 1], [], []>} : vector<16x8xbf16>, vector<8x32xbf16>, vector<16x32xf32> -> vector<16x32xf32>
    %65 = arith.addf %41, %64 : vector<16x32xf32>
    %66 = vector.extract_strided_slice %36 {offsets = [0, 0, 8], sizes = [2, 8, 8], strides = [1, 1, 1]} : vector<2x8x32xbf16> to vector<2x8x8xbf16>
    %67 = vector.extract_strided_slice %38 {offsets = [0, 0, 8], sizes = [2, 8, 8], strides = [1, 1, 1]} : vector<2x8x32xbf16> to vector<2x8x8xbf16>
    %68 = vector.extract_strided_slice %40 {offsets = [0, 0, 8], sizes = [2, 8, 8], strides = [1, 1, 1]} : vector<2x8x32xbf16> to vector<2x8x8xbf16>
    "tpu.trace_start"() <{level = 10 : i32, message = "bqd,bkd->bqk"}> : () -> ()
    %cst_39 = arith.constant dense<0.000000e+00> : vector<2x8x8xf32>
    %69 = tpu.matmul %66, %67, %cst_39 {dimension_numbers = #tpu.dot_dimension_numbers<[2], [2], [1], [1], [0, 0, 0, 1, 1, 1], [0], [0]>} : vector<2x8x8xbf16>, vector<2x8x8xbf16>, vector<2x8x8xf32> -> vector<2x8x8xf32>
    "tpu.trace_stop"() : () -> ()
    %cst_40 = arith.constant 0.353553385 : f32
    %70 = vector.broadcast %cst_40 : f32 to vector<2x8x8xf32>
    %71 = arith.mulf %69, %70 : vector<2x8x8xf32>
    %cst_41 = arith.constant dense<0xFF800000> : vector<2x8xf32>
    %72 = vector.multi_reduction <maximumf>, %71, %cst_41 [2] : vector<2x8x8xf32> to vector<2x8xf32>
    %73 = vector.shape_cast %72 : vector<2x8xf32> to vector<2x8x1xf32>
    %74 = vector.broadcast %73 : vector<2x8x1xf32> to vector<2x8x8xf32>
    %75 = arith.subf %71, %74 : vector<2x8x8xf32>
    %76 = math.exp %75 : vector<2x8x8xf32>
    %cst_42 = arith.constant dense<0.000000e+00> : vector<2x8xf32>
    %77 = vector.multi_reduction <add>, %76, %cst_42 [2] : vector<2x8x8xf32> to vector<2x8xf32>
    %78 = vector.shape_cast %77 : vector<2x8xf32> to vector<2x8x1xf32>
    %79 = tpu.reciprocal %78 {approx = true} : vector<2x8x1xf32> -> vector<2x8x1xf32>
    %80 = vector.broadcast %79 : vector<2x8x1xf32> to vector<2x8x8xf32>
    %81 = arith.mulf %76, %80 : vector<2x8x8xf32>
    %82 = arith.truncf %81 : vector<2x8x8xf32> to vector<2x8x8xbf16>
    "tpu.trace_start"() <{level = 10 : i32, message = "bqk,bkd->bqd"}> : () -> ()
    %cst_43 = arith.constant dense<0.000000e+00> : vector<2x8x8xf32>
    %83 = tpu.matmul %82, %68, %cst_43 {dimension_numbers = #tpu.dot_dimension_numbers<[2], [1], [1], [2], [0, 0, 0, 1, 1, 2], [0], [0]>} : vector<2x8x8xbf16>, vector<2x8x8xbf16>, vector<2x8x8xf32> -> vector<2x8x8xf32>
    "tpu.trace_stop"() : () -> ()
    %84 = vector.shape_cast %83 : vector<2x8x8xf32> to vector<16x8xf32>
    %85 = arith.truncf %84 : vector<16x8xf32> to vector<16x8xbf16>
    %c1 = arith.constant 1 : index
    %c0_44 = arith.constant 0 : index
    %c0_45 = arith.constant 0 : index
    %86 = vector.load %arg14[%c1, %c0_44, %c0_45] : memref<4x8x32xbf16, #tpu.memory_space<vmem>>, vector<1x8x32xbf16>
    %87 = vector.shape_cast %86 : vector<1x8x32xbf16> to vector<8x32xbf16>
    %cst_46 = arith.constant dense<0.000000e+00> : vector<16x32xf32>
    %88 = tpu.matmul %85, %87, %cst_46 {dimension_numbers = #tpu.dot_dimension_numbers<[1], [0], [0], [1], [0, 0, 1, 1], [], []>} : vector<16x8xbf16>, vector<8x32xbf16>, vector<16x32xf32> -> vector<16x32xf32>
    %89 = arith.addf %65, %88 : vector<16x32xf32>
    %90 = vector.extract_strided_slice %36 {offsets = [0, 0, 16], sizes = [2, 8, 8], strides = [1, 1, 1]} : vector<2x8x32xbf16> to vector<2x8x8xbf16>
    %91 = vector.extract_strided_slice %38 {offsets = [0, 0, 16], sizes = [2, 8, 8], strides = [1, 1, 1]} : vector<2x8x32xbf16> to vector<2x8x8xbf16>
    %92 = vector.extract_strided_slice %40 {offsets = [0, 0, 16], sizes = [2, 8, 8], strides = [1, 1, 1]} : vector<2x8x32xbf16> to vector<2x8x8xbf16>
    "tpu.trace_start"() <{level = 10 : i32, message = "bqd,bkd->bqk"}> : () -> ()
    %cst_47 = arith.constant dense<0.000000e+00> : vector<2x8x8xf32>
    %93 = tpu.matmul %90, %91, %cst_47 {dimension_numbers = #tpu.dot_dimension_numbers<[2], [2], [1], [1], [0, 0, 0, 1, 1, 1], [0], [0]>} : vector<2x8x8xbf16>, vector<2x8x8xbf16>, vector<2x8x8xf32> -> vector<2x8x8xf32>
    "tpu.trace_stop"() : () -> ()
    %cst_48 = arith.constant 0.353553385 : f32
    %94 = vector.broadcast %cst_48 : f32 to vector<2x8x8xf32>
    %95 = arith.mulf %93, %94 : vector<2x8x8xf32>
    %cst_49 = arith.constant dense<0xFF800000> : vector<2x8xf32>
    %96 = vector.multi_reduction <maximumf>, %95, %cst_49 [2] : vector<2x8x8xf32> to vector<2x8xf32>
    %97 = vector.shape_cast %96 : vector<2x8xf32> to vector<2x8x1xf32>
    %98 = vector.broadcast %97 : vector<2x8x1xf32> to vector<2x8x8xf32>
    %99 = arith.subf %95, %98 : vector<2x8x8xf32>
    %100 = math.exp %99 : vector<2x8x8xf32>
    %cst_50 = arith.constant dense<0.000000e+00> : vector<2x8xf32>
    %101 = vector.multi_reduction <add>, %100, %cst_50 [2] : vector<2x8x8xf32> to vector<2x8xf32>
    %102 = vector.shape_cast %101 : vector<2x8xf32> to vector<2x8x1xf32>
    %103 = tpu.reciprocal %102 {approx = true} : vector<2x8x1xf32> -> vector<2x8x1xf32>
    %104 = vector.broadcast %103 : vector<2x8x1xf32> to vector<2x8x8xf32>
    %105 = arith.mulf %100, %104 : vector<2x8x8xf32>
    %106 = arith.truncf %105 : vector<2x8x8xf32> to vector<2x8x8xbf16>
    "tpu.trace_start"() <{level = 10 : i32, message = "bqk,bkd->bqd"}> : () -> ()
    %cst_51 = arith.constant dense<0.000000e+00> : vector<2x8x8xf32>
    %107 = tpu.matmul %106, %92, %cst_51 {dimension_numbers = #tpu.dot_dimension_numbers<[2], [1], [1], [2], [0, 0, 0, 1, 1, 2], [0], [0]>} : vector<2x8x8xbf16>, vector<2x8x8xbf16>, vector<2x8x8xf32> -> vector<2x8x8xf32>
    "tpu.trace_stop"() : () -> ()
    %108 = vector.shape_cast %107 : vector<2x8x8xf32> to vector<16x8xf32>
    %109 = arith.truncf %108 : vector<16x8xf32> to vector<16x8xbf16>
    %c2 = arith.constant 2 : index
    %c0_52 = arith.constant 0 : index
    %c0_53 = arith.constant 0 : index
    %110 = vector.load %arg14[%c2, %c0_52, %c0_53] : memref<4x8x32xbf16, #tpu.memory_space<vmem>>, vector<1x8x32xbf16>
    %111 = vector.shape_cast %110 : vector<1x8x32xbf16> to vector<8x32xbf16>
    %cst_54 = arith.constant dense<0.000000e+00> : vector<16x32xf32>
    %112 = tpu.matmul %109, %111, %cst_54 {dimension_numbers = #tpu.dot_dimension_numbers<[1], [0], [0], [1], [0, 0, 1, 1], [], []>} : vector<16x8xbf16>, vector<8x32xbf16>, vector<16x32xf32> -> vector<16x32xf32>
    %113 = arith.addf %89, %112 : vector<16x32xf32>
    %114 = vector.extract_strided_slice %36 {offsets = [0, 0, 24], sizes = [2, 8, 8], strides = [1, 1, 1]} : vector<2x8x32xbf16> to vector<2x8x8xbf16>
    %115 = vector.extract_strided_slice %38 {offsets = [0, 0, 24], sizes = [2, 8, 8], strides = [1, 1, 1]} : vector<2x8x32xbf16> to vector<2x8x8xbf16>
    %116 = vector.extract_strided_slice %40 {offsets = [0, 0, 24], sizes = [2, 8, 8], strides = [1, 1, 1]} : vector<2x8x32xbf16> to vector<2x8x8xbf16>
    "tpu.trace_start"() <{level = 10 : i32, message = "bqd,bkd->bqk"}> : () -> ()
    %cst_55 = arith.constant dense<0.000000e+00> : vector<2x8x8xf32>
    %117 = tpu.matmul %114, %115, %cst_55 {dimension_numbers = #tpu.dot_dimension_numbers<[2], [2], [1], [1], [0, 0, 0, 1, 1, 1], [0], [0]>} : vector<2x8x8xbf16>, vector<2x8x8xbf16>, vector<2x8x8xf32> -> vector<2x8x8xf32>
    "tpu.trace_stop"() : () -> ()
    %cst_56 = arith.constant 0.353553385 : f32
    %118 = vector.broadcast %cst_56 : f32 to vector<2x8x8xf32>
    %119 = arith.mulf %117, %118 : vector<2x8x8xf32>
    %cst_57 = arith.constant dense<0xFF800000> : vector<2x8xf32>
    %120 = vector.multi_reduction <maximumf>, %119, %cst_57 [2] : vector<2x8x8xf32> to vector<2x8xf32>
    %121 = vector.shape_cast %120 : vector<2x8xf32> to vector<2x8x1xf32>
    %122 = vector.broadcast %121 : vector<2x8x1xf32> to vector<2x8x8xf32>
    %123 = arith.subf %119, %122 : vector<2x8x8xf32>
    %124 = math.exp %123 : vector<2x8x8xf32>
    %cst_58 = arith.constant dense<0.000000e+00> : vector<2x8xf32>
    %125 = vector.multi_reduction <add>, %124, %cst_58 [2] : vector<2x8x8xf32> to vector<2x8xf32>
    %126 = vector.shape_cast %125 : vector<2x8xf32> to vector<2x8x1xf32>
    %127 = tpu.reciprocal %126 {approx = true} : vector<2x8x1xf32> -> vector<2x8x1xf32>
    %128 = vector.broadcast %127 : vector<2x8x1xf32> to vector<2x8x8xf32>
    %129 = arith.mulf %124, %128 : vector<2x8x8xf32>
    %130 = arith.truncf %129 : vector<2x8x8xf32> to vector<2x8x8xbf16>
    "tpu.trace_start"() <{level = 10 : i32, message = "bqk,bkd->bqd"}> : () -> ()
    %cst_59 = arith.constant dense<0.000000e+00> : vector<2x8x8xf32>
    %131 = tpu.matmul %130, %116, %cst_59 {dimension_numbers = #tpu.dot_dimension_numbers<[2], [1], [1], [2], [0, 0, 0, 1, 1, 2], [0], [0]>} : vector<2x8x8xbf16>, vector<2x8x8xbf16>, vector<2x8x8xf32> -> vector<2x8x8xf32>
    "tpu.trace_stop"() : () -> ()
    %132 = vector.shape_cast %131 : vector<2x8x8xf32> to vector<16x8xf32>
    %133 = arith.truncf %132 : vector<16x8xf32> to vector<16x8xbf16>
    %c3 = arith.constant 3 : index
    %c0_60 = arith.constant 0 : index
    %c0_61 = arith.constant 0 : index
    %134 = vector.load %arg14[%c3, %c0_60, %c0_61] : memref<4x8x32xbf16, #tpu.memory_space<vmem>>, vector<1x8x32xbf16>
    %135 = vector.shape_cast %134 : vector<1x8x32xbf16> to vector<8x32xbf16>
    %cst_62 = arith.constant dense<0.000000e+00> : vector<16x32xf32>
    %136 = tpu.matmul %133, %135, %cst_62 {dimension_numbers = #tpu.dot_dimension_numbers<[1], [0], [0], [1], [0, 0, 1, 1], [], []>} : vector<16x8xbf16>, vector<8x32xbf16>, vector<16x32xf32> -> vector<16x32xf32>
    %137 = arith.addf %113, %136 : vector<16x32xf32>
    %c0_63 = arith.constant 0 : index
    %c0_64 = arith.constant 0 : index
    %138 = vector.load %arg15[%c0_63, %c0_64] : memref<1x32xf32, #tpu.memory_space<vmem>>, vector<1x32xf32>
    %139 = vector.broadcast %138 : vector<1x32xf32> to vector<16x32xf32>
    %140 = arith.addf %137, %139 : vector<16x32xf32>
    %141 = arith.addf %0, %140 : vector<16x32xf32>
    %c0_65 = arith.constant 0 : index
    %c0_66 = arith.constant 0 : index
    %142 = vector.load %arg16[%c0_65, %c0_66] : memref<1x32xf32, #tpu.memory_space<vmem>>, vector<1x32xf32>
    %c0_67 = arith.constant 0 : index
    %c0_68 = arith.constant 0 : index
    %143 = vector.load %arg17[%c0_67, %c0_68] : memref<1x32xf32, #tpu.memory_space<vmem>>, vector<1x32xf32>
    %cst_69 = arith.constant dense<0.000000e+00> : vector<16xf32>
    %144 = vector.multi_reduction <add>, %141, %cst_69 [1] : vector<16x32xf32> to vector<16xf32>
    %145 = vector.shape_cast %144 : vector<16xf32> to vector<16x1xf32>
    %cst_70 = arith.constant 3.200000e+01 : f32
    %146 = vector.broadcast %cst_70 : f32 to vector<16x1xf32>
    %147 = arith.divf %145, %146 : vector<16x1xf32>
    %148 = vector.broadcast %147 : vector<16x1xf32> to vector<16x32xf32>
    %149 = arith.subf %141, %148 : vector<16x32xf32>
    %150 = arith.mulf %149, %149 : vector<16x32xf32>
    %cst_71 = arith.constant dense<0.000000e+00> : vector<16xf32>
    %151 = vector.multi_reduction <add>, %150, %cst_71 [1] : vector<16x32xf32> to vector<16xf32>
    %152 = vector.shape_cast %151 : vector<16xf32> to vector<16x1xf32>
    %cst_72 = arith.constant 3.200000e+01 : f32
    %153 = vector.broadcast %cst_72 : f32 to vector<16x1xf32>
    %154 = arith.divf %152, %153 : vector<16x1xf32>
    %155 = vector.broadcast %147 : vector<16x1xf32> to vector<16x32xf32>
    %156 = arith.subf %141, %155 : vector<16x32xf32>
    %cst_73 = arith.constant 9.99999974E-6 : f32
    %157 = vector.broadcast %cst_73 : f32 to vector<16x1xf32>
    %158 = arith.addf %154, %157 : vector<16x1xf32>
    %159 = math.rsqrt %158 : vector<16x1xf32>
    %160 = vector.broadcast %159 : vector<16x1xf32> to vector<16x32xf32>
    %161 = arith.mulf %156, %160 : vector<16x32xf32>
    %162 = vector.broadcast %142 : vector<1x32xf32> to vector<16x32xf32>
    %163 = arith.mulf %161, %162 : vector<16x32xf32>
    %164 = vector.broadcast %143 : vector<1x32xf32> to vector<16x32xf32>
    %165 = arith.addf %163, %164 : vector<16x32xf32>
    %166 = arith.truncf %165 : vector<16x32xf32> to vector<16x32xbf16>
    %c0_74 = arith.constant 0 : index
    %c0_75 = arith.constant 0 : index
    %167 = vector.load %arg18[%c0_74, %c0_75] : memref<32x64xbf16, #tpu.memory_space<vmem>>, vector<32x64xbf16>
    %cst_76 = arith.constant dense<0.000000e+00> : vector<16x64xf32>
    %168 = tpu.matmul %166, %167, %cst_76 {dimension_numbers = #tpu.dot_dimension_numbers<[1], [0], [0], [1], [0, 0, 1, 1], [], []>} : vector<16x32xbf16>, vector<32x64xbf16>, vector<16x64xf32> -> vector<16x64xf32>
    %c0_77 = arith.constant 0 : index
    %c0_78 = arith.constant 0 : index
    %169 = vector.load %arg19[%c0_77, %c0_78] : memref<1x64xf32, #tpu.memory_space<vmem>>, vector<1x64xf32>
    %170 = vector.broadcast %169 : vector<1x64xf32> to vector<16x64xf32>
    %171 = arith.addf %168, %170 : vector<16x64xf32>
    %172 = arith.negf %171 : vector<16x64xf32>
    %173 = math.exp %172 : vector<16x64xf32>
    %cst_79 = arith.constant 1.000000e+00 : f32
    %174 = vector.broadcast %cst_79 : f32 to vector<16x64xf32>
    %175 = arith.addf %174, %173 : vector<16x64xf32>
    %176 = arith.divf %174, %175 : vector<16x64xf32>
    %177 = arith.mulf %171, %176 : vector<16x64xf32>
    %c0_80 = arith.constant 0 : index
    %c0_81 = arith.constant 0 : index
    %178 = vector.load %arg20[%c0_80, %c0_81] : memref<32x64xbf16, #tpu.memory_space<vmem>>, vector<32x64xbf16>
    %cst_82 = arith.constant dense<0.000000e+00> : vector<16x64xf32>
    %179 = tpu.matmul %166, %178, %cst_82 {dimension_numbers = #tpu.dot_dimension_numbers<[1], [0], [0], [1], [0, 0, 1, 1], [], []>} : vector<16x32xbf16>, vector<32x64xbf16>, vector<16x64xf32> -> vector<16x64xf32>
    %c0_83 = arith.constant 0 : index
    %c0_84 = arith.constant 0 : index
    %180 = vector.load %arg21[%c0_83, %c0_84] : memref<1x64xf32, #tpu.memory_space<vmem>>, vector<1x64xf32>
    %181 = vector.broadcast %180 : vector<1x64xf32> to vector<16x64xf32>
    %182 = arith.addf %179, %181 : vector<16x64xf32>
    %183 = arith.mulf %177, %182 : vector<16x64xf32>
    %184 = arith.truncf %183 : vector<16x64xf32> to vector<16x64xbf16>
    %c0_85 = arith.constant 0 : index
    %c0_86 = arith.constant 0 : index
    %185 = vector.load %arg22[%c0_85, %c0_86] : memref<64x32xbf16, #tpu.memory_space<vmem>>, vector<64x32xbf16>
    %cst_87 = arith.constant dense<0.000000e+00> : vector<16x32xf32>
    %186 = tpu.matmul %184, %185, %cst_87 {dimension_numbers = #tpu.dot_dimension_numbers<[1], [0], [0], [1], [0, 0, 1, 1], [], []>} : vector<16x64xbf16>, vector<64x32xbf16>, vector<16x32xf32> -> vector<16x32xf32>
    %c0_88 = arith.constant 0 : index
    %c0_89 = arith.constant 0 : index
    %187 = vector.load %arg23[%c0_88, %c0_89] : memref<1x32xf32, #tpu.memory_space<vmem>>, vector<1x32xf32>
    %188 = vector.broadcast %187 : vector<1x32xf32> to vector<16x32xf32>
    %189 = arith.addf %186, %188 : vector<16x32xf32>
    %190 = arith.addf %165, %189 : vector<16x32xf32>
    %c0_90 = arith.constant 0 : index
    %c0_91 = arith.constant 0 : index
    %191 = vector.load %arg24[%c0_90, %c0_91] : memref<1x32xf32, #tpu.memory_space<vmem>>, vector<1x32xf32>
    %c0_92 = arith.constant 0 : index
    %c0_93 = arith.constant 0 : index
    %192 = vector.load %arg25[%c0_92, %c0_93] : memref<1x32xf32, #tpu.memory_space<vmem>>, vector<1x32xf32>
    %cst_94 = arith.constant dense<0.000000e+00> : vector<16xf32>
    %193 = vector.multi_reduction <add>, %190, %cst_94 [1] : vector<16x32xf32> to vector<16xf32>
    %194 = vector.shape_cast %193 : vector<16xf32> to vector<16x1xf32>
    %cst_95 = arith.constant 3.200000e+01 : f32
    %195 = vector.broadcast %cst_95 : f32 to vector<16x1xf32>
    %196 = arith.divf %194, %195 : vector<16x1xf32>
    %197 = vector.broadcast %196 : vector<16x1xf32> to vector<16x32xf32>
    %198 = arith.subf %190, %197 : vector<16x32xf32>
    %199 = arith.mulf %198, %198 : vector<16x32xf32>
    %cst_96 = arith.constant dense<0.000000e+00> : vector<16xf32>
    %200 = vector.multi_reduction <add>, %199, %cst_96 [1] : vector<16x32xf32> to vector<16xf32>
    %201 = vector.shape_cast %200 : vector<16xf32> to vector<16x1xf32>
    %cst_97 = arith.constant 3.200000e+01 : f32
    %202 = vector.broadcast %cst_97 : f32 to vector<16x1xf32>
    %203 = arith.divf %201, %202 : vector<16x1xf32>
    %204 = vector.broadcast %196 : vector<16x1xf32> to vector<16x32xf32>
    %205 = arith.subf %190, %204 : vector<16x32xf32>
    %cst_98 = arith.constant 9.99999974E-6 : f32
    %206 = vector.broadcast %cst_98 : f32 to vector<16x1xf32>
    %207 = arith.addf %203, %206 : vector<16x1xf32>
    %208 = math.rsqrt %207 : vector<16x1xf32>
    %209 = vector.broadcast %208 : vector<16x1xf32> to vector<16x32xf32>
    %210 = arith.mulf %205, %209 : vector<16x32xf32>
    %211 = vector.broadcast %191 : vector<1x32xf32> to vector<16x32xf32>
    %212 = arith.mulf %210, %211 : vector<16x32xf32>
    %213 = vector.broadcast %192 : vector<1x32xf32> to vector<16x32xf32>
    %214 = arith.addf %212, %213 : vector<16x32xf32>
    %c0_99 = arith.constant 0 : index
    %c0_100 = arith.constant 0 : index
    %215 = vector.load %arg26[%c0_99, %c0_100] : memref<16x32xf32, #tpu.memory_space<vmem>>, vector<16x32xf32>
    tpu.vector_store %arg26[%c0_99, %c0_100], %214 {strides = array<i32>} : memref<16x32xf32, #tpu.memory_space<vmem>>, vector<16x32xf32>,
    return
  }
  func.func @transform_0(%arg0: i32) -> (i32, i32) {
    %c0_i32 = arith.constant 0 : i32
    %c0_i32_0 = arith.constant 0 : i32
    %c0_i32_1 = arith.constant 0 : i32
    return %c0_i32, %c0_i32_0 : i32, i32
  }
  func.func @transform_1(%arg0: i32) -> (i32, i32) {
    %c0_i32 = arith.constant 0 : i32
    %c0_i32_0 = arith.constant 0 : i32
    %c0_i32_1 = arith.constant 0 : i32
    return %c0_i32, %c0_i32_0 : i32, i32
  }
  func.func @transform_2(%arg0: i32) -> (i32, i32) {
    %c0_i32 = arith.constant 0 : i32
    %c0_i32_0 = arith.constant 0 : i32
    %c0_i32_1 = arith.constant 0 : i32
    return %c0_i32, %c0_i32_0 : i32, i32
  }
  func.func @transform_3(%arg0: i32) -> (i32, i32) {
    %c0_i32 = arith.constant 0 : i32
    %c0_i32_0 = arith.constant 0 : i32
    %c0_i32_1 = arith.constant 0 : i32
    return %c0_i32, %c0_i32_0 : i32, i32
  }
  func.func @transform_4(%arg0: i32) -> (i32, i32) {
    %c0_i32 = arith.constant 0 : i32
    %c0_i32_0 = arith.constant 0 : i32
    %c0_i32_1 = arith.constant 0 : i32
    return %c0_i32, %c0_i32_0 : i32, i32
  }
  func.func @transform_5(%arg0: i32) -> (i32, i32) {
    %c0_i32 = arith.constant 0 : i32
    %c0_i32_0 = arith.constant 0 : i32
    %c0_i32_1 = arith.constant 0 : i32
    return %c0_i32, %c0_i32_0 : i32, i32
  }
  func.func @transform_6(%arg0: i32) -> (i32, i32) {
    %c0_i32 = arith.constant 0 : i32
    %c0_i32_0 = arith.constant 0 : i32
    %c0_i32_1 = arith.constant 0 : i32
    return %c0_i32, %c0_i32_0 : i32, i32
  }
  func.func @transform_7(%arg0: i32) -> (i32, i32) {
    %c0_i32 = arith.constant 0 : i32
    %c0_i32_0 = arith.constant 0 : i32
    %c0_i32_1 = arith.constant 0 : i32
    return %c0_i32, %c0_i32_0 : i32, i32
  }
  func.func @transform_8(%arg0: i32) -> (i32, i32) {
    %c0_i32 = arith.constant 0 : i32
    %c0_i32_0 = arith.constant 0 : i32
    %c0_i32_1 = arith.constant 0 : i32
    return %c0_i32, %c0_i32_0 : i32, i32
  }
  func.func @transform_9(%arg0: i32) -> (i32, i32) {
    %c0_i32 = arith.constant 0 : i32
    %c0_i32_0 = arith.constant 0 : i32
    %c0_i32_1 = arith.constant 0 : i32
    return %c0_i32, %c0_i32_0 : i32, i32
  }
  func.func @transform_10(%arg0: i32) -> (i32, i32) {
    %c0_i32 = arith.constant 0 : i32
    %c0_i32_0 = arith.constant 0 : i32
    %c0_i32_1 = arith.constant 0 : i32
    return %c0_i32, %c0_i32_0 : i32, i32
  }
  func.func @transform_11(%arg0: i32) -> (i32, i32) {
    %c0_i32 = arith.constant 0 : i32
    %c0_i32_0 = arith.constant 0 : i32
    %c0_i32_1 = arith.constant 0 : i32
    return %c0_i32, %c0_i32_0 : i32, i32
  }
  func.func @transform_12(%arg0: i32) -> (i32, i32) {
    %c0_i32 = arith.constant 0 : i32
    %c0_i32_0 = arith.constant 0 : i32
    %c0_i32_1 = arith.constant 0 : i32
    return %c0_i32, %c0_i32_0 : i32, i32
  }
  func.func @transform_13(%arg0: i32) -> (i32, i32, i32) {
    %c0_i32 = arith.constant 0 : i32
    %c0_i32_0 = arith.constant 0 : i32
    %c0_i32_1 = arith.constant 0 : i32
    %c0_i32_2 = arith.constant 0 : i32
    return %c0_i32, %c0_i32_0, %c0_i32_1 : i32, i32, i32
  }
  func.func @transform_14(%arg0: i32) -> (i32, i32) {
    %c0_i32 = arith.constant 0 : i32
    %c0_i32_0 = arith.constant 0 : i32
    %c0_i32_1 = arith.constant 0 : i32
    return %c0_i32, %c0_i32_0 : i32, i32
  }
  func.func @transform_15(%arg0: i32) -> (i32, i32) {
    %c0_i32 = arith.constant 0 : i32
    %c0_i32_0 = arith.constant 0 : i32
    %c0_i32_1 = arith.constant 0 : i32
    return %c0_i32, %c0_i32_0 : i32, i32
  }
  func.func @transform_16(%arg0: i32) -> (i32, i32) {
    %c0_i32 = arith.constant 0 : i32
    %c0_i32_0 = arith.constant 0 : i32
    %c0_i32_1 = arith.constant 0 : i32
    return %c0_i32, %c0_i32_0 : i32, i32
  }
  func.func @transform_17(%arg0: i32) -> (i32, i32) {
    %c0_i32 = arith.constant 0 : i32
    %c0_i32_0 = arith.constant 0 : i32
    %c0_i32_1 = arith.constant 0 : i32
    return %c0_i32, %c0_i32_0 : i32, i32
  }
  func.func @transform_18(%arg0: i32) -> (i32, i32) {
    %c0_i32 = arith.constant 0 : i32
    %c0_i32_0 = arith.constant 0 : i32
    %c0_i32_1 = arith.constant 0 : i32
    return %c0_i32, %c0_i32_0 : i32, i32
  }
  func.func @transform_19(%arg0: i32) -> (i32, i32) {
    %c0_i32 = arith.constant 0 : i32
    %c0_i32_0 = arith.constant 0 : i32
    %c0_i32_1 = arith.constant 0 : i32
    return %c0_i32, %c0_i32_0 : i32, i32
  }
  func.func @transform_20(%arg0: i32) -> (i32, i32) {
    %c0_i32 = arith.constant 0 : i32
    %c0_i32_0 = arith.constant 0 : i32
    %c0_i32_1 = arith.constant 0 : i32
    return %c0_i32, %c0_i32_0 : i32, i32
  }
  func.func @transform_21(%arg0: i32) -> (i32, i32) {
    %c0_i32 = arith.constant 0 : i32
    %c0_i32_0 = arith.constant 0 : i32
    %c0_i32_1 = arith.constant 0 : i32
    return %c0_i32, %c0_i32_0 : i32, i32
  }
  func.func @transform_22(%arg0: i32) -> (i32, i32) {
    %c0_i32 = arith.constant 0 : i32
    %c0_i32_0 = arith.constant 0 : i32
    %c0_i32_1 = arith.constant 0 : i32
    return %c0_i32, %c0_i32_0 : i32, i32
  }
  func.func @transform_23(%arg0: i32) -> (i32, i32) {
    %c0_i32 = arith.constant 0 : i32
    %c0_i32_0 = arith.constant 0 : i32
    %c0_i32_1 = arith.constant 0 : i32
    return %c0_i32, %c0_i32_0 : i32, i32
  }
  func.func @transform_24(%arg0: i32) -> (i32, i32) {
    %c0_i32 = arith.constant 0 : i32
    %c0_i32_0 = arith.constant 0 : i32
    %c0_i32_1 = arith.constant 0 : i32
    return %c0_i32, %c0_i32_0 : i32, i32
  }
  func.func @transform_25(%arg0: i32) -> (i32, i32) {
    %c0_i32 = arith.constant 0 : i32
    %c0_i32_0 = arith.constant 0 : i32
    %c0_i32_1 = arith.constant 0 : i32
    return %c0_i32, %c0_i32_0 : i32, i32
  }
}

</mosaic_0001>

<llo_original>
// kernel: encoder_layer_forward.1
$region0: #{encoder_layer_forward.1}
  #allocation0 [shape = 'u32[]', space=smem, size = 0x4, offset = 0x4, fixed_abs, tag = 'smem constant byte address 0x4 - core index']
  #allocation1 [shape = 'u32[144,128]{1,0:T(1,128)}', space=vmem, size = 0x12000, scoped, tag = 'internal scratch']
  %s0 = inlined_call_operand.vmem [shape: f32[16,32], index: 0, kind: input, shape index: {}]
  %s1 = inlined_call_operand.vmem [shape: f32[16,32], index: 1, kind: input, shape index: {}]
  %s2 = inlined_call_operand.vmem [shape: f32[16,32], index: 2, kind: input, shape index: {}]
  %s3 = inlined_call_operand.vmem [shape: bf16[32,32], index: 3, kind: input, shape index: {}]
  %s4 = inlined_call_operand.vmem [shape: f32[1,32], index: 4, kind: input, shape index: {}]
  %s5 = inlined_call_operand.vmem [shape: bf16[32,32], index: 5, kind: input, shape index: {}]
  %s6 = inlined_call_operand.vmem [shape: f32[1,32], index: 6, kind: input, shape index: {}]
  %s7 = inlined_call_operand.vmem [shape: bf16[32,32], index: 7, kind: input, shape index: {}]
  %s8 = inlined_call_operand.vmem [shape: f32[1,32], index: 8, kind: input, shape index: {}]
  %s9 = inlined_call_operand.vmem [shape: bf16[32,32], index: 9, kind: input, shape index: {}]
  %s10 = inlined_call_operand.vmem [shape: f32[1,32], index: 10, kind: input, shape index: {}]
  %s11 = inlined_call_operand.vmem [shape: bf16[32,32], index: 11, kind: input, shape index: {}]
  %s12 = inlined_call_operand.vmem [shape: f32[1,32], index: 12, kind: input, shape index: {}]
  %s13 = inlined_call_operand.vmem [shape: bf16[4,8,32], index: 13, kind: input, shape index: {}]
  %s14 = inlined_call_operand.vmem [shape: f32[1,32], index: 14, kind: input, shape index: {}]
  %s15 = inlined_call_operand.vmem [shape: f32[1,32], index: 15, kind: input, shape index: {}]
  %s16 = inlined_call_operand.vmem [shape: f32[1,32], index: 16, kind: input, shape index: {}]
  %s17 = inlined_call_operand.vmem [shape: bf16[32,64], index: 17, kind: input, shape index: {}]
  %s18 = inlined_call_operand.vmem [shape: f32[1,64], index: 18, kind: input, shape index: {}]
  %s19 = inlined_call_operand.vmem [shape: bf16[32,64], index: 19, kind: input, shape index: {}]
  %s20 = inlined_call_operand.vmem [shape: f32[1,64], index: 20, kind: input, shape index: {}]
  %s21 = inlined_call_operand.vmem [shape: bf16[64,32], index: 21, kind: input, shape index: {}]
  %s22 = inlined_call_operand.vmem [shape: f32[1,32], index: 22, kind: input, shape index: {}]
  %s23 = inlined_call_operand.vmem [shape: f32[1,32], index: 23, kind: input, shape index: {}]
  %s24 = inlined_call_operand.vmem [shape: f32[1,32], index: 24, kind: input, shape index: {}]
  %s25 = inlined_call_operand.hbm [shape: f32[16,32], index: 25, kind: output, shape index: {}]
  %s26 = sld [smem:[#allocation0]]
  $region110: #{encoder_layer_forward.1} parent=0
    _
  %s28 = ssub.s32 1, %s26
  %s29 = scalar_select 0, %s28, %s26
  $region1: #{encoder_layer_forward.1} parent=0
    #allocation2 [shape = 'u8[8192]{0}', space=vmem, size = 0x2000, scoped, tag = 'output window, operand 0, single buffered']
    #allocation3 [shape = 's32[1]{0}', space=sflag, size = 0x4, scoped, tag = 'scoped memory for encoder_layer_forward.1']
    %30 = vsyncpa [#allocation3], 0
    // Predicated region
    $region2: #{encoder_layer_forward.1} parent=1 // pred_check
      _
    $region3: #{encoder_layer_forward.1} parent=1 // pred_check_branch
      %32 = sbr.rel (0) target = $region5
    $region4: #{encoder_layer_forward.1} parent=1 // pred_region
      _
    $region5: #{encoder_layer_forward.1} parent=1 // pred_fallthru
      _
    // Predicated region
    $region6: #{encoder_layer_forward.1} parent=1 // pred_check
      _
    $region7: #{encoder_layer_forward.1} parent=1 // pred_check_branch
      %34 = sbr.rel (0) target = $region9
    $region8: #{encoder_layer_forward.1} parent=1 // pred_region
      _
    $region9: #{encoder_layer_forward.1} parent=1 // pred_fallthru
      _
    // Predicated region
    $region10: #{encoder_layer_forward.1} parent=1 // pred_check
      _
    $region11: #{encoder_layer_forward.1} parent=1 // pred_check_branch
      %36 = sbr.rel (0) target = $region13
    $region12: #{encoder_layer_forward.1} parent=1 // pred_region
      _
    $region13: #{encoder_layer_forward.1} parent=1 // pred_fallthru
      _
    // Predicated region
    $region14: #{encoder_layer_forward.1} parent=1 // pred_check
      _
    $region15: #{encoder_layer_forward.1} parent=1 // pred_check_branch
      %38 = sbr.rel (0) target = $region17
    $region16: #{encoder_layer_forward.1} parent=1 // pred_region
      _
    $region17: #{encoder_layer_forward.1} parent=1 // pred_fallthru
      _
    // Predicated region
    $region18: #{encoder_layer_forward.1} parent=1 // pred_check
      _
    $region19: #{encoder_layer_forward.1} parent=1 // pred_check_branch
      %40 = sbr.rel (0) target = $region21
    $region20: #{encoder_layer_forward.1} parent=1 // pred_region
      _
    $region21: #{encoder_layer_forward.1} parent=1 // pred_fallthru
      _
    // Predicated region
    $region22: #{encoder_layer_forward.1} parent=1 // pred_check
      _
    $region23: #{encoder_layer_forward.1} parent=1 // pred_check_branch
      %42 = sbr.rel (0) target = $region25
    $region24: #{encoder_layer_forward.1} parent=1 // pred_region
      _
    $region25: #{encoder_layer_forward.1} parent=1 // pred_fallthru
      _
    // Predicated region
    $region26: #{encoder_layer_forward.1} parent=1 // pred_check
      _
    $region27: #{encoder_layer_forward.1} parent=1 // pred_check_branch
      %44 = sbr.rel (0) target = $region29
    $region28: #{encoder_layer_forward.1} parent=1 // pred_region
      _
    $region29: #{encoder_layer_forward.1} parent=1 // pred_fallthru
      _
    // Predicated region
    $region30: #{encoder_layer_forward.1} parent=1 // pred_check
      _
    $region31: #{encoder_layer_forward.1} parent=1 // pred_check_branch
      %46 = sbr.rel (0) target = $region33
    $region32: #{encoder_layer_forward.1} parent=1 // pred_region
      _
    $region33: #{encoder_layer_forward.1} parent=1 // pred_fallthru
      _
    // Predicated region
    $region34: #{encoder_layer_forward.1} parent=1 // pred_check
      _
    $region35: #{encoder_layer_forward.1} parent=1 // pred_check_branch
      %48 = sbr.rel (0) target = $region37
    $region36: #{encoder_layer_forward.1} parent=1 // pred_region
      _
    $region37: #{encoder_layer_forward.1} parent=1 // pred_fallthru
      _
    // Predicated region
    $region38: #{encoder_layer_forward.1} parent=1 // pred_check
      _
    $region39: #{encoder_layer_forward.1} parent=1 // pred_check_branch
      %50 = sbr.rel (0) target = $region41
    $region40: #{encoder_layer_forward.1} parent=1 // pred_region
      _
    $region41: #{encoder_layer_forward.1} parent=1 // pred_fallthru
      _
    // Predicated region
    $region42: #{encoder_layer_forward.1} parent=1 // pred_check
      _
    $region43: #{encoder_layer_forward.1} parent=1 // pred_check_branch
      %52 = sbr.rel (0) target = $region45
    $region44: #{encoder_layer_forward.1} parent=1 // pred_region
      _
    $region45: #{encoder_layer_forward.1} parent=1 // pred_fallthru
      _
    // Predicated region
    $region46: #{encoder_layer_forward.1} parent=1 // pred_check
      _
    $region47: #{encoder_layer_forward.1} parent=1 // pred_check_branch
      %54 = sbr.rel (0) target = $region49
    $region48: #{encoder_layer_forward.1} parent=1 // pred_region
      _
    $region49: #{encoder_layer_forward.1} parent=1 // pred_fallthru
      _
    // Predicated region
    $region50: #{encoder_layer_forward.1} parent=1 // pred_check
      _
    $region51: #{encoder_layer_forward.1} parent=1 // pred_check_branch
      %56 = sbr.rel (0) target = $region53
    $region52: #{encoder_layer_forward.1} parent=1 // pred_region
      _
    $region53: #{encoder_layer_forward.1} parent=1 // pred_fallthru
      _
    // Predicated region
    $region54: #{encoder_layer_forward.1} parent=1 // pred_check
      _
    $region55: #{encoder_layer_forward.1} parent=1 // pred_check_branch
      %58 = sbr.rel (0) target = $region57
    $region56: #{encoder_layer_forward.1} parent=1 // pred_region
      _
    $region57: #{encoder_layer_forward.1} parent=1 // pred_fallthru
      _
    // Predicated region
    $region58: #{encoder_layer_forward.1} parent=1 // pred_check
      _
    $region59: #{encoder_layer_forward.1} parent=1 // pred_check_branch
      %60 = sbr.rel (0) target = $region61
    $region60: #{encoder_layer_forward.1} parent=1 // pred_region
      _
    $region61: #{encoder_layer_forward.1} parent=1 // pred_fallthru
      _
    // Predicated region
    $region62: #{encoder_layer_forward.1} parent=1 // pred_check
      _
    $region63: #{encoder_layer_forward.1} parent=1 // pred_check_branch
      %62 = sbr.rel (0) target = $region65
    $region64: #{encoder_layer_forward.1} parent=1 // pred_region
      _
    $region65: #{encoder_layer_forward.1} parent=1 // pred_fallthru
      _
    // Predicated region
    $region66: #{encoder_layer_forward.1} parent=1 // pred_check
      _
    $region67: #{encoder_layer_forward.1} parent=1 // pred_check_branch
      %64 = sbr.rel (0) target = $region69
    $region68: #{encoder_layer_forward.1} parent=1 // pred_region
      _
    $region69: #{encoder_layer_forward.1} parent=1 // pred_fallthru
      _
    // Predicated region
    $region70: #{encoder_layer_forward.1} parent=1 // pred_check
      _
    $region71: #{encoder_layer_forward.1} parent=1 // pred_check_branch
      %66 = sbr.rel (0) target = $region73
    $region72: #{encoder_layer_forward.1} parent=1 // pred_region
      _
    $region73: #{encoder_layer_forward.1} parent=1 // pred_fallthru
      _
    // Predicated region
    $region74: #{encoder_layer_forward.1} parent=1 // pred_check
      _
    $region75: #{encoder_layer_forward.1} parent=1 // pred_check_branch
      %68 = sbr.rel (0) target = $region77
    $region76: #{encoder_layer_forward.1} parent=1 // pred_region
      _
    $region77: #{encoder_layer_forward.1} parent=1 // pred_fallthru
      _
    // Predicated region
    $region78: #{encoder_layer_forward.1} parent=1 // pred_check
      _
    $region79: #{encoder_layer_forward.1} parent=1 // pred_check_branch
      %70 = sbr.rel (0) target = $region81
    $region80: #{encoder_layer_forward.1} parent=1 // pred_region
      _
    $region81: #{encoder_layer_forward.1} parent=1 // pred_fallthru
      _
    // Predicated region
    $region82: #{encoder_layer_forward.1} parent=1 // pred_check
      _
    $region83: #{encoder_layer_forward.1} parent=1 // pred_check_branch
      %72 = sbr.rel (0) target = $region85
    $region84: #{encoder_layer_forward.1} parent=1 // pred_region
      _
    $region85: #{encoder_layer_forward.1} parent=1 // pred_fallthru
      _
    // Predicated region
    $region86: #{encoder_layer_forward.1} parent=1 // pred_check
      _
    $region87: #{encoder_layer_forward.1} parent=1 // pred_check_branch
      %74 = sbr.rel (0) target = $region89
    $region88: #{encoder_layer_forward.1} parent=1 // pred_region
      _
    $region89: #{encoder_layer_forward.1} parent=1 // pred_fallthru
      _
    // Predicated region
    $region90: #{encoder_layer_forward.1} parent=1 // pred_check
      _
    $region91: #{encoder_layer_forward.1} parent=1 // pred_check_branch
      %76 = sbr.rel (0) target = $region93
    $region92: #{encoder_layer_forward.1} parent=1 // pred_region
      _
    $region93: #{encoder_layer_forward.1} parent=1 // pred_fallthru
      _
    // Predicated region
    $region94: #{encoder_layer_forward.1} parent=1 // pred_check
      _
    $region95: #{encoder_layer_forward.1} parent=1 // pred_check_branch
      %78 = sbr.rel (0) target = $region97
    $region96: #{encoder_layer_forward.1} parent=1 // pred_region
      _
    $region97: #{encoder_layer_forward.1} parent=1 // pred_fallthru
      _
    // Predicated region
    $region98: #{encoder_layer_forward.1} parent=1 // pred_check
      _
    $region99: #{encoder_layer_forward.1} parent=1 // pred_check_branch
      %80 = sbr.rel (0) target = $region101
    $region100: #{encoder_layer_forward.1} parent=1 // pred_region
      _
    $region101: #{encoder_layer_forward.1} parent=1 // pred_fallthru
      _
    %v82 = vld [vmem:[%s0] sm:$0xff]
    %v83 = vld [vmem:[%s0 + $0x8] sm:$0xff]
    %v84 = vpack.c.bf16 %v83, %v82
    %v85 = vld [vmem:[%s1] sm:$0xff]
    %v86 = vld [vmem:[%s1 + $0x8] sm:$0xff]
    %v87 = vld [vmem:[%s2] sm:$0xff]
    %v88 = vld [vmem:[%s2 + $0x8] sm:$0xff]
    %v89 = vld [vmem:[%s3] sm:$0xf]
    %v90 = vld [vmem:[%s3 + $0x4] sm:$0xf]
    %v91 = vld [vmem:[%s3 + $0x8] sm:$0xf]
    %v92 = vld [vmem:[%s3 + $0xc] sm:$0xf]
    %v93 = vld [vmem:[%s4] sm:$0x1]
    %v95 = vlaneseq
    %v96 = vshrl.u32 %v95, 7
    %v97 = vsub.s32 0, %v96
    %v98 = vrot.slane %v93, %v97
    %v104 = vunpack.c.l.b16 %v89
    %v105 = vunpack.c.l.b16 %v90
    %v106 = vunpack.c.l.b16 %v91
    %v107 = vunpack.c.l.b16 %v92
    %v108 = vpack.c.b16 %v105, %v104
    %v109 = vpack.c.b16 %v107, %v106
    %vm112 = vcmask 261120
    %v114 = vsel %vm112, %v84, 0
    %116 = vmatprep.subr.bf16.mxu0 0
    %117 = vmatpush1.bf16.msra.mxu0 0
    %118 = vmatprep.subr.bf16.mxu0 0
    %119 = vmatpush1.bf16.msra.mxu0 0
    %120 = vmatprep.subr.bf16.mxu0 0
    %121 = vmatpush1.bf16.msra.mxu0 0
    %122 = vmatprep.subr.bf16.mxu0 0
    %123 = vmatpush1.bf16.msra.mxu0 0
    %124 = vmatprep.subr.bf16.mxu0 0
    %125 = vmatpush1.bf16.msra.mxu0 0
    %126 = vmatprep.subr.bf16.mxu0 0
    %127 = vmatpush1.bf16.msra.mxu0 0
    %128 = vmatprep.subr.bf16.mxu0 0
    %129 = vmatpush1.bf16.msra.mxu0 %v109
    %130 = vmatprep.subr.bf16.mxu0 0
    %131 = vmatpush1.bf16.msra.mxu0 %v108
    %132 = vmatprep.subr.bf16.mxu0 0
    %133 = vmatpush2.bf16.msra.mxu0 0
    %134 = vmatprep.subr.bf16.mxu0 0
    %135 = vmatpush2.bf16.msra.mxu0 0
    %136 = vmatprep.subr.bf16.mxu0 0
    %137 = vmatpush2.bf16.msra.mxu0 0
    %138 = vmatprep.subr.bf16.mxu0 0
    %139 = vmatpush2.bf16.msra.mxu0 0
    %140 = vmatprep.subr.bf16.mxu0 0
    %141 = vmatpush2.bf16.msra.mxu0 0
    %142 = vmatprep.subr.bf16.mxu0 0
    %143 = vmatpush2.bf16.msra.mxu0 0
    %144 = vmatprep.subr.bf16.mxu0 0
    %145 = vmatpush2.bf16.msra.mxu0 0
    %146 = vmatprep.subr.bf16.mxu0 0
    %147 = vmatpush2.bf16.msra.mxu0 0
    %148 = vmatprep.mubr.bf16.mxu0 0
    %149 = vmatmul.mubr.bf16.gmra.mxu0 %v114
    %v150 = vpop.f32.mrf.mxu0
    %v151 = vadd.f32 %v98, %v150
    %v152 = vpop.f32.mrf.mxu0
    %v153 = vpop.f32.mrf.mxu0
    %v154 = vadd.f32 %v98, %v153
    %v155 = vpop.f32.mrf.mxu0
    %156 = vdwg.mxu0
    %v157 = vld [vmem:[%s5] sm:$0xf]
    %v158 = vld [vmem:[%s5 + $0x4] sm:$0xf]
    %v159 = vld [vmem:[%s5 + $0x8] sm:$0xf]
    %v160 = vld [vmem:[%s5 + $0xc] sm:$0xf]
    %v161 = vld [vmem:[%s6] sm:$0x1]
    %v163 = vlaneseq
    %v164 = vshrl.u32 %v163, 7
    %v165 = vsub.s32 0, %v164
    %v166 = vrot.slane %v161, %v165
    %v172 = vunpack.c.l.b16 %v157
    %v173 = vunpack.c.l.b16 %v158
    %v174 = vunpack.c.l.b16 %v159
    %v175 = vunpack.c.l.b16 %v160
    %v176 = vpack.c.b16 %v173, %v172
    %v177 = vpack.c.b16 %v175, %v174
    %180 = vmatprep.subr.bf16.mxu0 0
    %181 = vmatpush1.bf16.msra.mxu0 0
    %182 = vmatprep.subr.bf16.mxu0 0
    %183 = vmatpush1.bf16.msra.mxu0 0
    %184 = vmatprep.subr.bf16.mxu0 0
    %185 = vmatpush1.bf16.msra.mxu0 0
    %186 = vmatprep.subr.bf16.mxu0 0
    %187 = vmatpush1.bf16.msra.mxu0 0
    %188 = vmatprep.subr.bf16.mxu0 0
    %189 = vmatpush1.bf16.msra.mxu0 0
    %190 = vmatprep.subr.bf16.mxu0 0
    %191 = vmatpush1.bf16.msra.mxu0 0
    %192 = vmatprep.subr.bf16.mxu0 0
    %193 = vmatpush1.bf16.msra.mxu0 %v177
    %194 = vmatprep.subr.bf16.mxu0 0
    %195 = vmatpush1.bf16.msra.mxu0 %v176
    %196 = vmatprep.subr.bf16.mxu0 0
    %197 = vmatpush2.bf16.msra.mxu0 0
    %198 = vmatprep.subr.bf16.mxu0 0
    %199 = vmatpush2.bf16.msra.mxu0 0
    %200 = vmatprep.subr.bf16.mxu0 0
    %201 = vmatpush2.bf16.msra.mxu0 0
    %202 = vmatprep.subr.bf16.mxu0 0
    %203 = vmatpush2.bf16.msra.mxu0 0
    %204 = vmatprep.subr.bf16.mxu0 0
    %205 = vmatpush2.bf16.msra.mxu0 0
    %206 = vmatprep.subr.bf16.mxu0 0
    %207 = vmatpush2.bf16.msra.mxu0 0
    %208 = vmatprep.subr.bf16.mxu0 0
    %209 = vmatpush2.bf16.msra.mxu0 0
    %210 = vmatprep.subr.bf16.mxu0 0
    %211 = vmatpush2.bf16.msra.mxu0 0
    %212 = vmatprep.mubr.bf16.mxu0 0
    %213 = vmatmul.mubr.bf16.gmra.mxu0 %v114
    %v214 = vpop.f32.mrf.mxu0
    %v215 = vadd.f32 %v166, %v214
    %v216 = vpop.f32.mrf.mxu0
    %v217 = vpop.f32.mrf.mxu0
    %v218 = vadd.f32 %v166, %v217
    %v219 = vpop.f32.mrf.mxu0
    %220 = vdwg.mxu0
    %v221 = vld [vmem:[%s7] sm:$0xf]
    %v222 = vld [vmem:[%s7 + $0x4] sm:$0xf]
    %v223 = vld [vmem:[%s7 + $0x8] sm:$0xf]
    %v224 = vld [vmem:[%s7 + $0xc] sm:$0xf]
    %v225 = vld [vmem:[%s8] sm:$0x1]
    %v227 = vlaneseq
    %v228 = vshrl.u32 %v227, 7
    %v229 = vsub.s32 0, %v228
    %v230 = vrot.slane %v225, %v229
    %v236 = vunpack.c.l.b16 %v221
    %v237 = vunpack.c.l.b16 %v222
    %v238 = vunpack.c.l.b16 %v223
    %v239 = vunpack.c.l.b16 %v224
    %v240 = vpack.c.b16 %v237, %v236
    %v241 = vpack.c.b16 %v239, %v238
    %244 = vmatprep.subr.bf16.mxu0 0
    %245 = vmatpush1.bf16.msra.mxu0 0
    %246 = vmatprep.subr.bf16.mxu0 0
    %247 = vmatpush1.bf16.msra.mxu0 0
    %248 = vmatprep.subr.bf16.mxu0 0
    %249 = vmatpush1.bf16.msra.mxu0 0
    %250 = vmatprep.subr.bf16.mxu0 0
    %251 = vmatpush1.bf16.msra.mxu0 0
    %252 = vmatprep.subr.bf16.mxu0 0
    %253 = vmatpush1.bf16.msra.mxu0 0
    %254 = vmatprep.subr.bf16.mxu0 0
    %255 = vmatpush1.bf16.msra.mxu0 0
    %256 = vmatprep.subr.bf16.mxu0 0
    %257 = vmatpush1.bf16.msra.mxu0 %v241
    %258 = vmatprep.subr.bf16.mxu0 0
    %259 = vmatpush1.bf16.msra.mxu0 %v240
    %260 = vmatprep.subr.bf16.mxu0 0
    %261 = vmatpush2.bf16.msra.mxu0 0
    %262 = vmatprep.subr.bf16.mxu0 0
    %263 = vmatpush2.bf16.msra.mxu0 0
    %264 = vmatprep.subr.bf16.mxu0 0
    %265 = vmatpush2.bf16.msra.mxu0 0
    %266 = vmatprep.subr.bf16.mxu0 0
    %267 = vmatpush2.bf16.msra.mxu0 0
    %268 = vmatprep.subr.bf16.mxu0 0
    %269 = vmatpush2.bf16.msra.mxu0 0
    %270 = vmatprep.subr.bf16.mxu0 0
    %271 = vmatpush2.bf16.msra.mxu0 0
    %272 = vmatprep.subr.bf16.mxu0 0
    %273 = vmatpush2.bf16.msra.mxu0 0
    %274 = vmatprep.subr.bf16.mxu0 0
    %275 = vmatpush2.bf16.msra.mxu0 0
    %276 = vmatprep.mubr.bf16.mxu0 0
    %277 = vmatmul.mubr.bf16.gmra.mxu0 %v114
    %v278 = vpop.f32.mrf.mxu0
    %v279 = vadd.f32 %v230, %v278
    %v280 = vpop.f32.mrf.mxu0
    %v281 = vpop.f32.mrf.mxu0
    %v282 = vadd.f32 %v230, %v281
    %v283 = vpop.f32.mrf.mxu0
    %284 = vdwg.mxu0
    %v285 = vld [vmem:[%s9] sm:$0xf]
    %v286 = vld [vmem:[%s9 + $0x4] sm:$0xf]
    %v287 = vld [vmem:[%s9 + $0x8] sm:$0xf]
    %v288 = vld [vmem:[%s9 + $0xc] sm:$0xf]
    %v289 = vld [vmem:[%s10] sm:$0x1]
    %v291 = vlaneseq
    %v292 = vshrl.u32 %v291, 7
    %v293 = vsub.s32 0, %v292
    %v294 = vrot.slane %v289, %v293
    %v300 = vunpack.c.l.b16 %v285
    %v301 = vunpack.c.l.b16 %v286
    %v302 = vunpack.c.l.b16 %v287
    %v303 = vunpack.c.l.b16 %v288
    %v304 = vpack.c.b16 %v301, %v300
    %v305 = vpack.c.b16 %v303, %v302
    %308 = vmatprep.subr.bf16.mxu0 0
    %309 = vmatpush1.bf16.msra.mxu0 0
    %310 = vmatprep.subr.bf16.mxu0 0
    %311 = vmatpush1.bf16.msra.mxu0 0
    %312 = vmatprep.subr.bf16.mxu0 0
    %313 = vmatpush1.bf16.msra.mxu0 0
    %314 = vmatprep.subr.bf16.mxu0 0
    %315 = vmatpush1.bf16.msra.mxu0 0
    %316 = vmatprep.subr.bf16.mxu0 0
    %317 = vmatpush1.bf16.msra.mxu0 0
    %318 = vmatprep.subr.bf16.mxu0 0
    %319 = vmatpush1.bf16.msra.mxu0 0
    %320 = vmatprep.subr.bf16.mxu0 0
    %321 = vmatpush1.bf16.msra.mxu0 %v305
    %322 = vmatprep.subr.bf16.mxu0 0
    %323 = vmatpush1.bf16.msra.mxu0 %v304
    %324 = vmatprep.subr.bf16.mxu0 0
    %325 = vmatpush2.bf16.msra.mxu0 0
    %326 = vmatprep.subr.bf16.mxu0 0
    %327 = vmatpush2.bf16.msra.mxu0 0
    %328 = vmatprep.subr.bf16.mxu0 0
    %329 = vmatpush2.bf16.msra.mxu0 0
    %330 = vmatprep.subr.bf16.mxu0 0
    %331 = vmatpush2.bf16.msra.mxu0 0
    %332 = vmatprep.subr.bf16.mxu0 0
    %333 = vmatpush2.bf16.msra.mxu0 0
    %334 = vmatprep.subr.bf16.mxu0 0
    %335 = vmatpush2.bf16.msra.mxu0 0
    %336 = vmatprep.subr.bf16.mxu0 0
    %337 = vmatpush2.bf16.msra.mxu0 0
    %338 = vmatprep.subr.bf16.mxu0 0
    %339 = vmatpush2.bf16.msra.mxu0 0
    %340 = vmatprep.mubr.bf16.mxu0 0
    %341 = vmatmul.mubr.bf16.gmra.mxu0 %v114
    %v342 = vpop.f32.mrf.mxu0
    %v343 = vadd.f32 %v294, %v342
    %v344 = vpop.f32.mrf.mxu0
    %v345 = vpop.f32.mrf.mxu0
    %v346 = vadd.f32 %v294, %v345
    %v347 = vpop.f32.mrf.mxu0
    %348 = vdwg.mxu0
    %v349 = vld [vmem:[%s11] sm:$0xf]
    %v350 = vld [vmem:[%s11 + $0x4] sm:$0xf]
    %v351 = vld [vmem:[%s11 + $0x8] sm:$0xf]
    %v352 = vld [vmem:[%s11 + $0xc] sm:$0xf]
    %v353 = vld [vmem:[%s12] sm:$0x1]
    %v355 = vlaneseq
    %v356 = vshrl.u32 %v355, 7
    %v357 = vsub.s32 0, %v356
    %v358 = vrot.slane %v353, %v357
    %v364 = vunpack.c.l.b16 %v349
    %v365 = vunpack.c.l.b16 %v350
    %v366 = vunpack.c.l.b16 %v351
    %v367 = vunpack.c.l.b16 %v352
    %v368 = vpack.c.b16 %v365, %v364
    %v369 = vpack.c.b16 %v367, %v366
    %372 = vmatprep.subr.bf16.mxu0 0
    %373 = vmatpush1.bf16.msra.mxu0 0
    %374 = vmatprep.subr.bf16.mxu0 0
    %375 = vmatpush1.bf16.msra.mxu0 0
    %376 = vmatprep.subr.bf16.mxu0 0
    %377 = vmatpush1.bf16.msra.mxu0 0
    %378 = vmatprep.subr.bf16.mxu0 0
    %379 = vmatpush1.bf16.msra.mxu0 0
    %380 = vmatprep.subr.bf16.mxu0 0
    %381 = vmatpush1.bf16.msra.mxu0 0
    %382 = vmatprep.subr.bf16.mxu0 0
    %383 = vmatpush1.bf16.msra.mxu0 0
    %384 = vmatprep.subr.bf16.mxu0 0
    %385 = vmatpush1.bf16.msra.mxu0 %v369
    %386 = vmatprep.subr.bf16.mxu0 0
    %387 = vmatpush1.bf16.msra.mxu0 %v368
    %388 = vmatprep.subr.bf16.mxu0 0
    %389 = vmatpush2.bf16.msra.mxu0 0
    %390 = vmatprep.subr.bf16.mxu0 0
    %391 = vmatpush2.bf16.msra.mxu0 0
    %392 = vmatprep.subr.bf16.mxu0 0
    %393 = vmatpush2.bf16.msra.mxu0 0
    %394 = vmatprep.subr.bf16.mxu0 0
    %395 = vmatpush2.bf16.msra.mxu0 0
    %396 = vmatprep.subr.bf16.mxu0 0
    %397 = vmatpush2.bf16.msra.mxu0 0
    %398 = vmatprep.subr.bf16.mxu0 0
    %399 = vmatpush2.bf16.msra.mxu0 0
    %400 = vmatprep.subr.bf16.mxu0 0
    %401 = vmatpush2.bf16.msra.mxu0 0
    %402 = vmatprep.subr.bf16.mxu0 0
    %403 = vmatpush2.bf16.msra.mxu0 0
    %404 = vmatprep.mubr.bf16.mxu0 0
    %405 = vmatmul.mubr.bf16.gmra.mxu0 %v114
    %v406 = vpop.f32.mrf.mxu0
    %v407 = vadd.f32 %v358, %v406
    %v408 = vpop.f32.mrf.mxu0
    %v409 = vpop.f32.mrf.mxu0
    %v410 = vadd.f32 %v358, %v409
    %v411 = vpop.f32.mrf.mxu0
    %412 = vdwg.mxu0
    %v413 = vmul.f32 %v151, %v85
    %v414 = vmul.f32 %v154, %v86
    %v415 = vmul.f32 %v215, %v87
    %v416 = vmul.f32 %v218, %v88
    %v417 = vadd.f32 %v413, %v415
    %v418 = vadd.f32 %v414, %v416
    %v419 = vmul.f32 %v279, %v85
    %v420 = vmul.f32 %v282, %v86
    %v421 = vmul.f32 %v343, %v87
    %v422 = vmul.f32 %v346, %v88
    %v423 = vadd.f32 %v419, %v421
    %v424 = vadd.f32 %v420, %v422
    %v425 = vpack.c.bf16 %v417, %v417
    %v426 = vpack.c.bf16 %v418, %v418
    %v427 = vpack.c.bf16 %v423, %v423
    %v428 = vpack.c.bf16 %v424, %v424
    %v429 = vpack.c.bf16 %v407, %v407
    %v430 = vpack.c.bf16 %v410, %v410
    %vm431 = vcmask 64512
    %v433 = vsel %vm431, %v425, 0
    %v436 = vsel %vm431, %v427, 0
    %438 = vmatprep.subr.bf16.mxu0 0
    %439 = vmatpush1.bf16.xpose.msra.mxu0 0
    %440 = vmatprep.subr.bf16.mxu0 0
    %441 = vmatpush1.bf16.xpose.msra.mxu0 0
    %442 = vmatprep.subr.bf16.mxu0 0
    %443 = vmatpush1.bf16.xpose.msra.mxu0 0
    %444 = vmatprep.subr.bf16.mxu0 0
    %445 = vmatpush1.bf16.xpose.msra.mxu0 0
    %446 = vmatprep.subr.bf16.mxu0 0
    %447 = vmatpush1.bf16.xpose.msra.mxu0 0
    %448 = vmatprep.subr.bf16.mxu0 0
    %449 = vmatpush1.bf16.xpose.msra.mxu0 0
    %450 = vmatprep.subr.bf16.mxu0 0
    %451 = vmatpush1.bf16.xpose.msra.mxu0 0
    %452 = vmatprep.subr.bf16.mxu0 0
    %453 = vmatpush1.bf16.xpose.msra.mxu0 %v436
    %454 = vmatprep.subr.bf16.mxu0 0
    %455 = vmatpush2.bf16.xpose.msra.mxu0 0
    %456 = vmatprep.subr.bf16.mxu0 0
    %457 = vmatpush2.bf16.xpose.msra.mxu0 0
    %458 = vmatprep.subr.bf16.mxu0 0
    %459 = vmatpush2.bf16.xpose.msra.mxu0 0
    %460 = vmatprep.subr.bf16.mxu0 0
    %461 = vmatpush2.bf16.xpose.msra.mxu0 0
    %462 = vmatprep.subr.bf16.mxu0 0
    %463 = vmatpush2.bf16.xpose.msra.mxu0 0
    %464 = vmatprep.subr.bf16.mxu0 0
    %465 = vmatpush2.bf16.xpose.msra.mxu0 0
    %466 = vmatprep.subr.bf16.mxu0 0
    %467 = vmatpush2.bf16.xpose.msra.mxu0 0
    %468 = vmatprep.subr.bf16.mxu0 0
    %469 = vmatpush2.bf16.xpose.msra.mxu0 0
    %470 = vmatprep.mubr.bf16.mxu0 0
    %471 = vmatmul.mubr.bf16.gmra.mxu0 %v433
    %v472 = vpop.f32.mrf.mxu0
    %v473 = vadd.f32 0.0, %v472
    %v474 = vpop.f32.mrf.mxu0
    %v475 = vpop.f32.mrf.mxu0
    %v476 = vpop.f32.mrf.mxu0
    %477 = vdwg.mxu0
    %v479 = vsel %vm431, %v426, 0
    %v482 = vsel %vm431, %v428, 0
    %484 = vmatprep.subr.bf16.mxu0 0
    %485 = vmatpush1.bf16.xpose.msra.mxu0 0
    %486 = vmatprep.subr.bf16.mxu0 0
    %487 = vmatpush1.bf16.xpose.msra.mxu0 0
    %488 = vmatprep.subr.bf16.mxu0 0
    %489 = vmatpush1.bf16.xpose.msra.mxu0 0
    %490 = vmatprep.subr.bf16.mxu0 0
    %491 = vmatpush1.bf16.xpose.msra.mxu0 0
    %492 = vmatprep.subr.bf16.mxu0 0
    %493 = vmatpush1.bf16.xpose.msra.mxu0 0
    %494 = vmatprep.subr.bf16.mxu0 0
    %495 = vmatpush1.bf16.xpose.msra.mxu0 0
    %496 = vmatprep.subr.bf16.mxu0 0
    %497 = vmatpush1.bf16.xpose.msra.mxu0 0
    %498 = vmatprep.subr.bf16.mxu0 0
    %499 = vmatpush1.bf16.xpose.msra.mxu0 %v482
    %500 = vmatprep.subr.bf16.mxu0 0
    %501 = vmatpush2.bf16.xpose.msra.mxu0 0
    %502 = vmatprep.subr.bf16.mxu0 0
    %503 = vmatpush2.bf16.xpose.msra.mxu0 0
    %504 = vmatprep.subr.bf16.mxu0 0
    %505 = vmatpush2.bf16.xpose.msra.mxu0 0
    %506 = vmatprep.subr.bf16.mxu0 0
    %507 = vmatpush2.bf16.xpose.msra.mxu0 0
    %508 = vmatprep.subr.bf16.mxu0 0
    %509 = vmatpush2.bf16.xpose.msra.mxu0 0
    %510 = vmatprep.subr.bf16.mxu0 0
    %511 = vmatpush2.bf16.xpose.msra.mxu0 0
    %512 = vmatprep.subr.bf16.mxu0 0
    %513 = vmatpush2.bf16.xpose.msra.mxu0 0
    %514 = vmatprep.subr.bf16.mxu0 0
    %515 = vmatpush2.bf16.xpose.msra.mxu0 0
    %516 = vmatprep.mubr.bf16.mxu0 0
    %517 = vmatmul.mubr.bf16.gmra.mxu0 %v479
    %v518 = vpop.f32.mrf.mxu0
    %v519 = vadd.f32 0.0, %v518
    %v520 = vpop.f32.mrf.mxu0
    %v521 = vpop.f32.mrf.mxu0
    %v522 = vpop.f32.mrf.mxu0
    %523 = vdwg.mxu0
    %v524 = vmul.f32 %v473, 0.35355338
    %v525 = vmul.f32 %v519, 0.35355338
    %v526 = vsel %vm431, %v524, -inf
    %527 = vmax.xlane.f32.xlu0 %v526
    %v528 = vpop.xlane.xlu0 %527
    %v529 = vsel %vm431, %v525, -inf
    %530 = vmax.xlane.f32.xlu0 %v529
    %v531 = vpop.xlane.xlu0 %530
    %v532 = vsub.f32 %v524, %v528
    %v533 = vsub.f32 %v525, %v531
    %v534 = vmul.f32 %v532, 1.442695
    %v535 = vpow.pop %v534
    %v536 = vmul.f32 %v533, 1.442695
    %v537 = vpow.pop %v536
    %v538 = vsel %vm431, %v535, 0.0
    %539 = vadd.xlane.f32.xlu0 %v538
    %v540 = vpop.xlane.xlu0 %539
    %v541 = vsel %vm431, %v537, 0.0
    %542 = vadd.xlane.f32.xlu0 %v541
    %v543 = vpop.xlane.xlu0 %542
    %v544 = vrcp.pop %v540
    %v545 = vrcp.pop %v543
    %v546 = vmul.f32 %v535, %v544
    %v547 = vmul.f32 %v537, %v545
    %v548 = vpack.c.bf16 %v546, %v546
    %v549 = vpack.c.bf16 %v547, %v547
    %v551 = vsel %vm431, %v548, 0
    %vm553 = vcmask 1043456
    %v555 = vsel %vm553, %v429, 0
    %557 = vmatprep.subr.bf16.mxu0 0
    %558 = vmatpush1.bf16.msra.mxu0 0
    %559 = vmatprep.subr.bf16.mxu0 0
    %560 = vmatpush1.bf16.msra.mxu0 0
    %561 = vmatprep.subr.bf16.mxu0 0
    %562 = vmatpush1.bf16.msra.mxu0 0
    %563 = vmatprep.subr.bf16.mxu0 0
    %564 = vmatpush1.bf16.msra.mxu0 0
    %565 = vmatprep.subr.bf16.mxu0 0
    %566 = vmatpush1.bf16.msra.mxu0 0
    %567 = vmatprep.subr.bf16.mxu0 0
    %568 = vmatpush1.bf16.msra.mxu0 0
    %569 = vmatprep.subr.bf16.mxu0 0
    %570 = vmatpush1.bf16.msra.mxu0 0
    %571 = vmatprep.subr.bf16.mxu0 0
    %572 = vmatpush1.bf16.msra.mxu0 %v555
    %573 = vmatprep.subr.bf16.mxu0 0
    %574 = vmatpush2.bf16.msra.mxu0 0
    %575 = vmatprep.subr.bf16.mxu0 0
    %576 = vmatpush2.bf16.msra.mxu0 0
    %577 = vmatprep.subr.bf16.mxu0 0
    %578 = vmatpush2.bf16.msra.mxu0 0
    %579 = vmatprep.subr.bf16.mxu0 0
    %580 = vmatpush2.bf16.msra.mxu0 0
    %581 = vmatprep.subr.bf16.mxu0 0
    %582 = vmatpush2.bf16.msra.mxu0 0
    %583 = vmatprep.subr.bf16.mxu0 0
    %584 = vmatpush2.bf16.msra.mxu0 0
    %585 = vmatprep.subr.bf16.mxu0 0
    %586 = vmatpush2.bf16.msra.mxu0 0
    %587 = vmatprep.subr.bf16.mxu0 0
    %588 = vmatpush2.bf16.msra.mxu0 0
    %589 = vmatprep.mubr.bf16.mxu0 0
    %590 = vmatmul.mubr.bf16.gmra.mxu0 %v551
    %v591 = vpop.f32.mrf.mxu0
    %v592 = vadd.f32 0.0, %v591
    %v593 = vpop.f32.mrf.mxu0
    %v594 = vpop.f32.mrf.mxu0
    %v595 = vpop.f32.mrf.mxu0
    %596 = vdwg.mxu0
    %v598 = vsel %vm431, %v549, 0
    %v601 = vsel %vm553, %v430, 0
    %603 = vmatprep.subr.bf16.mxu0 0
    %604 = vmatpush1.bf16.msra.mxu0 0
    %605 = vmatprep.subr.bf16.mxu0 0
    %606 = vmatpush1.bf16.msra.mxu0 0
    %607 = vmatprep.subr.bf16.mxu0 0
    %608 = vmatpush1.bf16.msra.mxu0 0
    %609 = vmatprep.subr.bf16.mxu0 0
    %610 = vmatpush1.bf16.msra.mxu0 0
    %611 = vmatprep.subr.bf16.mxu0 0
    %612 = vmatpush1.bf16.msra.mxu0 0
    %613 = vmatprep.subr.bf16.mxu0 0
    %614 = vmatpush1.bf16.msra.mxu0 0
    %615 = vmatprep.subr.bf16.mxu0 0
    %616 = vmatpush1.bf16.msra.mxu0 0
    %617 = vmatprep.subr.bf16.mxu0 0
    %618 = vmatpush1.bf16.msra.mxu0 %v601
    %619 = vmatprep.subr.bf16.mxu0 0
    %620 = vmatpush2.bf16.msra.mxu0 0
    %621 = vmatprep.subr.bf16.mxu0 0
    %622 = vmatpush2.bf16.msra.mxu0 0
    %623 = vmatprep.subr.bf16.mxu0 0
    %624 = vmatpush2.bf16.msra.mxu0 0
    %625 = vmatprep.subr.bf16.mxu0 0
    %626 = vmatpush2.bf16.msra.mxu0 0
    %627 = vmatprep.subr.bf16.mxu0 0
    %628 = vmatpush2.bf16.msra.mxu0 0
    %629 = vmatprep.subr.bf16.mxu0 0
    %630 = vmatpush2.bf16.msra.mxu0 0
    %631 = vmatprep.subr.bf16.mxu0 0
    %632 = vmatpush2.bf16.msra.mxu0 0
    %633 = vmatprep.subr.bf16.mxu0 0
    %634 = vmatpush2.bf16.msra.mxu0 0
    %635 = vmatprep.mubr.bf16.mxu0 0
    %636 = vmatmul.mubr.bf16.gmra.mxu0 %v598
    %v637 = vpop.f32.mrf.mxu0
    %v638 = vadd.f32 0.0, %v637
    %v639 = vpop.f32.mrf.mxu0
    %v640 = vpop.f32.mrf.mxu0
    %v641 = vpop.f32.mrf.mxu0
    %642 = vdwg.mxu0
    %v643 = vpack.c.bf16 %v638, %v592
    %v644 = vld [vmem:[%s13] sm:$0xf]
    %646 = vrot.lane.b32.xlu0 %v425, 120
    %v647 = vpop.permute.xlu0 %646
    %649 = vrot.lane.b32.xlu0 %v427, 120
    %v650 = vpop.permute.xlu0 %649
    %v652 = vsel %vm431, %v647, 0
    %v655 = vsel %vm431, %v650, 0
    %657 = vmatprep.subr.bf16.mxu0 0
    %658 = vmatpush1.bf16.xpose.msra.mxu0 0
    %659 = vmatprep.subr.bf16.mxu0 0
    %660 = vmatpush1.bf16.xpose.msra.mxu0 0
    %661 = vmatprep.subr.bf16.mxu0 0
    %662 = vmatpush1.bf16.xpose.msra.mxu0 0
    %663 = vmatprep.subr.bf16.mxu0 0
    %664 = vmatpush1.bf16.xpose.msra.mxu0 0
    %665 = vmatprep.subr.bf16.mxu0 0
    %666 = vmatpush1.bf16.xpose.msra.mxu0 0
    %667 = vmatprep.subr.bf16.mxu0 0
    %668 = vmatpush1.bf16.xpose.msra.mxu0 0
    %669 = vmatprep.subr.bf16.mxu0 0
    %670 = vmatpush1.bf16.xpose.msra.mxu0 0
    %671 = vmatprep.subr.bf16.mxu0 0
    %672 = vmatpush1.bf16.xpose.msra.mxu0 %v655
    %673 = vmatprep.subr.bf16.mxu0 0
    %674 = vmatpush2.bf16.xpose.msra.mxu0 0
    %675 = vmatprep.subr.bf16.mxu0 0
    %676 = vmatpush2.bf16.xpose.msra.mxu0 0
    %677 = vmatprep.subr.bf16.mxu0 0
    %678 = vmatpush2.bf16.xpose.msra.mxu0 0
    %679 = vmatprep.subr.bf16.mxu0 0
    %680 = vmatpush2.bf16.xpose.msra.mxu0 0
    %681 = vmatprep.subr.bf16.mxu0 0
    %682 = vmatpush2.bf16.xpose.msra.mxu0 0
    %683 = vmatprep.subr.bf16.mxu0 0
    %684 = vmatpush2.bf16.xpose.msra.mxu0 0
    %685 = vmatprep.subr.bf16.mxu0 0
    %686 = vmatpush2.bf16.xpose.msra.mxu0 0
    %687 = vmatprep.subr.bf16.mxu0 0
    %688 = vmatpush2.bf16.xpose.msra.mxu0 0
    %689 = vmatprep.mubr.bf16.mxu0 0
    %690 = vmatmul.mubr.bf16.gmra.mxu0 %v652
    %v691 = vpop.f32.mrf.mxu0
    %v692 = vadd.f32 0.0, %v691
    %v693 = vpop.f32.mrf.mxu0
    %v694 = vpop.f32.mrf.mxu0
    %v695 = vpop.f32.mrf.mxu0
    %696 = vdwg.mxu0
    %698 = vrot.lane.b32.xlu0 %v426, 120
    %v699 = vpop.permute.xlu0 %698
    %701 = vrot.lane.b32.xlu0 %v428, 120
    %v702 = vpop.permute.xlu0 %701
    %v704 = vsel %vm431, %v699, 0
    %v707 = vsel %vm431, %v702, 0
    %709 = vmatprep.subr.bf16.mxu0 0
    %710 = vmatpush1.bf16.xpose.msra.mxu0 0
    %711 = vmatprep.subr.bf16.mxu0 0
    %712 = vmatpush1.bf16.xpose.msra.mxu0 0
    %713 = vmatprep.subr.bf16.mxu0 0
    %714 = vmatpush1.bf16.xpose.msra.mxu0 0
    %715 = vmatprep.subr.bf16.mxu0 0
    %716 = vmatpush1.bf16.xpose.msra.mxu0 0
    %717 = vmatprep.subr.bf16.mxu0 0
    %718 = vmatpush1.bf16.xpose.msra.mxu0 0
    %719 = vmatprep.subr.bf16.mxu0 0
    %720 = vmatpush1.bf16.xpose.msra.mxu0 0
    %721 = vmatprep.subr.bf16.mxu0 0
    %722 = vmatpush1.bf16.xpose.msra.mxu0 0
    %723 = vmatprep.subr.bf16.mxu0 0
    %724 = vmatpush1.bf16.xpose.msra.mxu0 %v707
    %725 = vmatprep.subr.bf16.mxu0 0
    %726 = vmatpush2.bf16.xpose.msra.mxu0 0
    %727 = vmatprep.subr.bf16.mxu0 0
    %728 = vmatpush2.bf16.xpose.msra.mxu0 0
    %729 = vmatprep.subr.bf16.mxu0 0
    %730 = vmatpush2.bf16.xpose.msra.mxu0 0
    %731 = vmatprep.subr.bf16.mxu0 0
    %732 = vmatpush2.bf16.xpose.msra.mxu0 0
    %733 = vmatprep.subr.bf16.mxu0 0
    %734 = vmatpush2.bf16.xpose.msra.mxu0 0
    %735 = vmatprep.subr.bf16.mxu0 0
    %736 = vmatpush2.bf16.xpose.msra.mxu0 0
    %737 = vmatprep.subr.bf16.mxu0 0
    %738 = vmatpush2.bf16.xpose.msra.mxu0 0
    %739 = vmatprep.subr.bf16.mxu0 0
    %740 = vmatpush2.bf16.xpose.msra.mxu0 0
    %741 = vmatprep.mubr.bf16.mxu0 0
    %742 = vmatmul.mubr.bf16.gmra.mxu0 %v704
    %v743 = vpop.f32.mrf.mxu0
    %v744 = vadd.f32 0.0, %v743
    %v745 = vpop.f32.mrf.mxu0
    %v746 = vpop.f32.mrf.mxu0
    %v747 = vpop.f32.mrf.mxu0
    %748 = vdwg.mxu0
    %v749 = vmul.f32 %v692, 0.35355338
    %v750 = vmul.f32 %v744, 0.35355338
    %v751 = vsel %vm431, %v749, -inf
    %752 = vmax.xlane.f32.xlu0 %v751
    %v753 = vpop.xlane.xlu0 %752
    %v754 = vsel %vm431, %v750, -inf
    %755 = vmax.xlane.f32.xlu0 %v754
    %v756 = vpop.xlane.xlu0 %755
    %v757 = vsub.f32 %v749, %v753
    %v758 = vsub.f32 %v750, %v756
    %v759 = vmul.f32 %v757, 1.442695
    %v760 = vpow.pop %v759
    %v761 = vmul.f32 %v758, 1.442695
    %v762 = vpow.pop %v761
    %v763 = vsel %vm431, %v760, 0.0
    %764 = vadd.xlane.f32.xlu0 %v763
    %v765 = vpop.xlane.xlu0 %764
    %v766 = vsel %vm431, %v762, 0.0
    %767 = vadd.xlane.f32.xlu0 %v766
    %v768 = vpop.xlane.xlu0 %767
    %v769 = vrcp.pop %v765
    %v770 = vrcp.pop %v768
    %v771 = vmul.f32 %v760, %v769
    %v772 = vmul.f32 %v762, %v770
    %v773 = vpack.c.bf16 %v771, %v771
    %v774 = vpack.c.bf16 %v772, %v772
    %776 = vrot.lane.b32.xlu0 %v429, 120
    %v777 = vpop.permute.xlu0 %776
    %v779 = vsel %vm431, %v773, 0
    %v782 = vsel %vm553, %v777, 0
    %784 = vmatprep.subr.bf16.mxu0 0
    %785 = vmatpush1.bf16.msra.mxu0 0
    %786 = vmatprep.subr.bf16.mxu0 0
    %787 = vmatpush1.bf16.msra.mxu0 0
    %788 = vmatprep.subr.bf16.mxu0 0
    %789 = vmatpush1.bf16.msra.mxu0 0
    %790 = vmatprep.subr.bf16.mxu0 0
    %791 = vmatpush1.bf16.msra.mxu0 0
    %792 = vmatprep.subr.bf16.mxu0 0
    %793 = vmatpush1.bf16.msra.mxu0 0
    %794 = vmatprep.subr.bf16.mxu0 0
    %795 = vmatpush1.bf16.msra.mxu0 0
    %796 = vmatprep.subr.bf16.mxu0 0
    %797 = vmatpush1.bf16.msra.mxu0 0
    %798 = vmatprep.subr.bf16.mxu0 0
    %799 = vmatpush1.bf16.msra.mxu0 %v782
    %800 = vmatprep.subr.bf16.mxu0 0
    %801 = vmatpush2.bf16.msra.mxu0 0
    %802 = vmatprep.subr.bf16.mxu0 0
    %803 = vmatpush2.bf16.msra.mxu0 0
    %804 = vmatprep.subr.bf16.mxu0 0
    %805 = vmatpush2.bf16.msra.mxu0 0
    %806 = vmatprep.subr.bf16.mxu0 0
    %807 = vmatpush2.bf16.msra.mxu0 0
    %808 = vmatprep.subr.bf16.mxu0 0
    %809 = vmatpush2.bf16.msra.mxu0 0
    %810 = vmatprep.subr.bf16.mxu0 0
    %811 = vmatpush2.bf16.msra.mxu0 0
    %812 = vmatprep.subr.bf16.mxu0 0
    %813 = vmatpush2.bf16.msra.mxu0 0
    %814 = vmatprep.subr.bf16.mxu0 0
    %815 = vmatpush2.bf16.msra.mxu0 0
    %816 = vmatprep.mubr.bf16.mxu0 0
    %817 = vmatmul.mubr.bf16.gmra.mxu0 %v779
    %v818 = vpop.f32.mrf.mxu0
    %v819 = vadd.f32 0.0, %v818
    %v820 = vpop.f32.mrf.mxu0
    %v821 = vpop.f32.mrf.mxu0
    %v822 = vpop.f32.mrf.mxu0
    %823 = vdwg.mxu0
    %825 = vrot.lane.b32.xlu0 %v430, 120
    %v826 = vpop.permute.xlu0 %825
    %v828 = vsel %vm431, %v774, 0
    %v831 = vsel %vm553, %v826, 0
    %833 = vmatprep.subr.bf16.mxu0 0
    %834 = vmatpush1.bf16.msra.mxu0 0
    %835 = vmatprep.subr.bf16.mxu0 0
    %836 = vmatpush1.bf16.msra.mxu0 0
    %837 = vmatprep.subr.bf16.mxu0 0
    %838 = vmatpush1.bf16.msra.mxu0 0
    %839 = vmatprep.subr.bf16.mxu0 0
    %840 = vmatpush1.bf16.msra.mxu0 0
    %841 = vmatprep.subr.bf16.mxu0 0
    %842 = vmatpush1.bf16.msra.mxu0 0
    %843 = vmatprep.subr.bf16.mxu0 0
    %844 = vmatpush1.bf16.msra.mxu0 0
    %845 = vmatprep.subr.bf16.mxu0 0
    %846 = vmatpush1.bf16.msra.mxu0 0
    %847 = vmatprep.subr.bf16.mxu0 0
    %848 = vmatpush1.bf16.msra.mxu0 %v831
    %849 = vmatprep.subr.bf16.mxu0 0
    %850 = vmatpush2.bf16.msra.mxu0 0
    %851 = vmatprep.subr.bf16.mxu0 0
    %852 = vmatpush2.bf16.msra.mxu0 0
    %853 = vmatprep.subr.bf16.mxu0 0
    %854 = vmatpush2.bf16.msra.mxu0 0
    %855 = vmatprep.subr.bf16.mxu0 0
    %856 = vmatpush2.bf16.msra.mxu0 0
    %857 = vmatprep.subr.bf16.mxu0 0
    %858 = vmatpush2.bf16.msra.mxu0 0
    %859 = vmatprep.subr.bf16.mxu0 0
    %860 = vmatpush2.bf16.msra.mxu0 0
    %861 = vmatprep.subr.bf16.mxu0 0
    %862 = vmatpush2.bf16.msra.mxu0 0
    %863 = vmatprep.subr.bf16.mxu0 0
    %864 = vmatpush2.bf16.msra.mxu0 0
    %865 = vmatprep.mubr.bf16.mxu0 0
    %866 = vmatmul.mubr.bf16.gmra.mxu0 %v828
    %v867 = vpop.f32.mrf.mxu0
    %v868 = vadd.f32 0.0, %v867
    %v869 = vpop.f32.mrf.mxu0
    %v870 = vpop.f32.mrf.mxu0
    %v871 = vpop.f32.mrf.mxu0
    %872 = vdwg.mxu0
    %v873 = vpack.c.bf16 %v868, %v819
    %s874 = scalar_lea.vmem %s13, 4
    %v875 = vld [vmem:[%s874] sm:$0xf]
    %v877 = vsel %vm431, %v873, 0
    %v880 = vsel %vm553, %v875, 0
    %882 = vmatprep.subr.bf16.mxu0 0
    %883 = vmatpush1.bf16.msra.mxu0 0
    %884 = vmatprep.subr.bf16.mxu0 0
    %885 = vmatpush1.bf16.msra.mxu0 0
    %886 = vmatprep.subr.bf16.mxu0 0
    %887 = vmatpush1.bf16.msra.mxu0 0
    %888 = vmatprep.subr.bf16.mxu0 0
    %889 = vmatpush1.bf16.msra.mxu0 0
    %890 = vmatprep.subr.bf16.mxu0 0
    %891 = vmatpush1.bf16.msra.mxu0 0
    %892 = vmatprep.subr.bf16.mxu0 0
    %893 = vmatpush1.bf16.msra.mxu0 0
    %894 = vmatprep.subr.bf16.mxu0 0
    %895 = vmatpush1.bf16.msra.mxu0 0
    %896 = vmatprep.subr.bf16.mxu0 0
    %897 = vmatpush1.bf16.msra.mxu0 %v880
    %898 = vmatprep.subr.bf16.mxu0 0
    %899 = vmatpush2.bf16.msra.mxu0 0
    %900 = vmatprep.subr.bf16.mxu0 0
    %901 = vmatpush2.bf16.msra.mxu0 0
    %902 = vmatprep.subr.bf16.mxu0 0
    %903 = vmatpush2.bf16.msra.mxu0 0
    %904 = vmatprep.subr.bf16.mxu0 0
    %905 = vmatpush2.bf16.msra.mxu0 0
    %906 = vmatprep.subr.bf16.mxu0 0
    %907 = vmatpush2.bf16.msra.mxu0 0
    %908 = vmatprep.subr.bf16.mxu0 0
    %909 = vmatpush2.bf16.msra.mxu0 0
    %910 = vmatprep.subr.bf16.mxu0 0
    %911 = vmatpush2.bf16.msra.mxu0 0
    %912 = vmatprep.subr.bf16.mxu0 0
    %913 = vmatpush2.bf16.msra.mxu0 0
    %914 = vmatprep.mubr.bf16.mxu0 0
    %915 = vmatmul.mubr.bf16.gmra.mxu0 %v877
    %v916 = vpop.f32.mrf.mxu0
    %v917 = vadd.f32 0.0, %v916
    %v918 = vpop.f32.mrf.mxu0
    %v919 = vpop.f32.mrf.mxu0
    %v920 = vadd.f32 0.0, %v919
    %v921 = vpop.f32.mrf.mxu0
    %922 = vdwg.mxu0
    %v924 = vsel %vm431, %v643, 0
    %v927 = vsel %vm553, %v644, 0
    %929 = vmatprep.subr.bf16.mxu0 0
    %930 = vmatpush1.bf16.msra.mxu0 0
    %931 = vmatprep.subr.bf16.mxu0 0
    %932 = vmatpush1.bf16.msra.mxu0 0
    %933 = vmatprep.subr.bf16.mxu0 0
    %934 = vmatpush1.bf16.msra.mxu0 0
    %935 = vmatprep.subr.bf16.mxu0 0
    %936 = vmatpush1.bf16.msra.mxu0 0
    %937 = vmatprep.subr.bf16.mxu0 0
    %938 = vmatpush1.bf16.msra.mxu0 0
    %939 = vmatprep.subr.bf16.mxu0 0
    %940 = vmatpush1.bf16.msra.mxu0 0
    %941 = vmatprep.subr.bf16.mxu0 0
    %942 = vmatpush1.bf16.msra.mxu0 0
    %943 = vmatprep.subr.bf16.mxu0 0
    %944 = vmatpush1.bf16.msra.mxu0 %v927
    %945 = vmatprep.subr.bf16.mxu0 0
    %946 = vmatpush2.bf16.msra.mxu0 0
    %947 = vmatprep.subr.bf16.mxu0 0
    %948 = vmatpush2.bf16.msra.mxu0 0
    %949 = vmatprep.subr.bf16.mxu0 0
    %950 = vmatpush2.bf16.msra.mxu0 0
    %951 = vmatprep.subr.bf16.mxu0 0
    %952 = vmatpush2.bf16.msra.mxu0 0
    %953 = vmatprep.subr.bf16.mxu0 0
    %954 = vmatpush2.bf16.msra.mxu0 0
    %955 = vmatprep.subr.bf16.mxu0 0
    %956 = vmatpush2.bf16.msra.mxu0 0
    %957 = vmatprep.subr.bf16.mxu0 0
    %958 = vmatpush2.bf16.msra.mxu0 0
    %959 = vmatprep.subr.bf16.mxu0 0
    %960 = vmatpush2.bf16.msra.mxu0 0
    %961 = vmatprep.mubr.bf16.mxu0 0
    %962 = vmatmul.mubr.bf16.gmra.mxu0 %v924
    %v963 = vpop.f32.mrf.mxu0
    %v964 = vadd.f32 %v917, %v963
    %v965 = vpop.f32.mrf.mxu0
    %v966 = vpop.f32.mrf.mxu0
    %v967 = vadd.f32 %v920, %v966
    %v968 = vpop.f32.mrf.mxu0
    %969 = vdwg.mxu0
    %970 = vrot.lane.b32.xlu0 %v425, 112
    %v971 = vpop.permute.xlu0 %970
    %972 = vrot.lane.b32.xlu0 %v427, 112
    %v973 = vpop.permute.xlu0 %972
    %v975 = vsel %vm431, %v971, 0
    %v978 = vsel %vm431, %v973, 0
    %980 = vmatprep.subr.bf16.mxu0 0
    %981 = vmatpush1.bf16.xpose.msra.mxu0 0
    %982 = vmatprep.subr.bf16.mxu0 0
    %983 = vmatpush1.bf16.xpose.msra.mxu0 0
    %984 = vmatprep.subr.bf16.mxu0 0
    %985 = vmatpush1.bf16.xpose.msra.mxu0 0
    %986 = vmatprep.subr.bf16.mxu0 0
    %987 = vmatpush1.bf16.xpose.msra.mxu0 0
    %988 = vmatprep.subr.bf16.mxu0 0
    %989 = vmatpush1.bf16.xpose.msra.mxu0 0
    %990 = vmatprep.subr.bf16.mxu0 0
    %991 = vmatpush1.bf16.xpose.msra.mxu0 0
    %992 = vmatprep.subr.bf16.mxu0 0
    %993 = vmatpush1.bf16.xpose.msra.mxu0 0
    %994 = vmatprep.subr.bf16.mxu0 0
    %995 = vmatpush1.bf16.xpose.msra.mxu0 %v978
    %996 = vmatprep.subr.bf16.mxu0 0
    %997 = vmatpush2.bf16.xpose.msra.mxu0 0
    %998 = vmatprep.subr.bf16.mxu0 0
    %999 = vmatpush2.bf16.xpose.msra.mxu0 0
    %1000 = vmatprep.subr.bf16.mxu0 0
    %1001 = vmatpush2.bf16.xpose.msra.mxu0 0
    %1002 = vmatprep.subr.bf16.mxu0 0
    %1003 = vmatpush2.bf16.xpose.msra.mxu0 0
    %1004 = vmatprep.subr.bf16.mxu0 0
    %1005 = vmatpush2.bf16.xpose.msra.mxu0 0
    %1006 = vmatprep.subr.bf16.mxu0 0
    %1007 = vmatpush2.bf16.xpose.msra.mxu0 0
    %1008 = vmatprep.subr.bf16.mxu0 0
    %1009 = vmatpush2.bf16.xpose.msra.mxu0 0
    %1010 = vmatprep.subr.bf16.mxu0 0
    %1011 = vmatpush2.bf16.xpose.msra.mxu0 0
    %1012 = vmatprep.mubr.bf16.mxu0 0
    %1013 = vmatmul.mubr.bf16.gmra.mxu0 %v975
    %v1014 = vpop.f32.mrf.mxu0
    %v1015 = vadd.f32 0.0, %v1014
    %v1016 = vpop.f32.mrf.mxu0
    %v1017 = vpop.f32.mrf.mxu0
    %v1018 = vpop.f32.mrf.mxu0
    %1019 = vdwg.mxu0
    %1020 = vrot.lane.b32.xlu0 %v426, 112
    %v1021 = vpop.permute.xlu0 %1020
    %1022 = vrot.lane.b32.xlu0 %v428, 112
    %v1023 = vpop.permute.xlu0 %1022
    %v1025 = vsel %vm431, %v1021, 0
    %v1028 = vsel %vm431, %v1023, 0
    %1030 = vmatprep.subr.bf16.mxu0 0
    %1031 = vmatpush1.bf16.xpose.msra.mxu0 0
    %1032 = vmatprep.subr.bf16.mxu0 0
    %1033 = vmatpush1.bf16.xpose.msra.mxu0 0
    %1034 = vmatprep.subr.bf16.mxu0 0
    %1035 = vmatpush1.bf16.xpose.msra.mxu0 0
    %1036 = vmatprep.subr.bf16.mxu0 0
    %1037 = vmatpush1.bf16.xpose.msra.mxu0 0
    %1038 = vmatprep.subr.bf16.mxu0 0
    %1039 = vmatpush1.bf16.xpose.msra.mxu0 0
    %1040 = vmatprep.subr.bf16.mxu0 0
    %1041 = vmatpush1.bf16.xpose.msra.mxu0 0
    %1042 = vmatprep.subr.bf16.mxu0 0
    %1043 = vmatpush1.bf16.xpose.msra.mxu0 0
    %1044 = vmatprep.subr.bf16.mxu0 0
    %1045 = vmatpush1.bf16.xpose.msra.mxu0 %v1028
    %1046 = vmatprep.subr.bf16.mxu0 0
    %1047 = vmatpush2.bf16.xpose.msra.mxu0 0
    %1048 = vmatprep.subr.bf16.mxu0 0
    %1049 = vmatpush2.bf16.xpose.msra.mxu0 0
    %1050 = vmatprep.subr.bf16.mxu0 0
    %1051 = vmatpush2.bf16.xpose.msra.mxu0 0
    %1052 = vmatprep.subr.bf16.mxu0 0
    %1053 = vmatpush2.bf16.xpose.msra.mxu0 0
    %1054 = vmatprep.subr.bf16.mxu0 0
    %1055 = vmatpush2.bf16.xpose.msra.mxu0 0
    %1056 = vmatprep.subr.bf16.mxu0 0
    %1057 = vmatpush2.bf16.xpose.msra.mxu0 0
    %1058 = vmatprep.subr.bf16.mxu0 0
    %1059 = vmatpush2.bf16.xpose.msra.mxu0 0
    %1060 = vmatprep.subr.bf16.mxu0 0
    %1061 = vmatpush2.bf16.xpose.msra.mxu0 0
    %1062 = vmatprep.mubr.bf16.mxu0 0
    %1063 = vmatmul.mubr.bf16.gmra.mxu0 %v1025
    %v1064 = vpop.f32.mrf.mxu0
    %v1065 = vadd.f32 0.0, %v1064
    %v1066 = vpop.f32.mrf.mxu0
    %v1067 = vpop.f32.mrf.mxu0
    %v1068 = vpop.f32.mrf.mxu0
    %1069 = vdwg.mxu0
    %v1070 = vmul.f32 %v1015, 0.35355338
    %v1071 = vmul.f32 %v1065, 0.35355338
    %v1072 = vsel %vm431, %v1070, -inf
    %1073 = vmax.xlane.f32.xlu0 %v1072
    %v1074 = vpop.xlane.xlu0 %1073
    %v1075 = vsel %vm431, %v1071, -inf
    %1076 = vmax.xlane.f32.xlu0 %v1075
    %v1077 = vpop.xlane.xlu0 %1076
    %v1078 = vsub.f32 %v1070, %v1074
    %v1079 = vsub.f32 %v1071, %v1077
    %v1080 = vmul.f32 %v1078, 1.442695
    %v1081 = vpow.pop %v1080
    %v1082 = vmul.f32 %v1079, 1.442695
    %v1083 = vpow.pop %v1082
    %v1084 = vsel %vm431, %v1081, 0.0
    %1085 = vadd.xlane.f32.xlu0 %v1084
    %v1086 = vpop.xlane.xlu0 %1085
    %v1087 = vsel %vm431, %v1083, 0.0
    %1088 = vadd.xlane.f32.xlu0 %v1087
    %v1089 = vpop.xlane.xlu0 %1088
    %v1090 = vrcp.pop %v1086
    %v1091 = vrcp.pop %v1089
    %v1092 = vmul.f32 %v1081, %v1090
    %v1093 = vmul.f32 %v1083, %v1091
    %v1094 = vpack.c.bf16 %v1092, %v1092
    %v1095 = vpack.c.bf16 %v1093, %v1093
    %1096 = vrot.lane.b32.xlu0 %v429, 112
    %v1097 = vpop.permute.xlu0 %1096
    %v1099 = vsel %vm431, %v1094, 0
    %v1102 = vsel %vm553, %v1097, 0
    %1104 = vmatprep.subr.bf16.mxu0 0
    %1105 = vmatpush1.bf16.msra.mxu0 0
    %1106 = vmatprep.subr.bf16.mxu0 0
    %1107 = vmatpush1.bf16.msra.mxu0 0
    %1108 = vmatprep.subr.bf16.mxu0 0
    %1109 = vmatpush1.bf16.msra.mxu0 0
    %1110 = vmatprep.subr.bf16.mxu0 0
    %1111 = vmatpush1.bf16.msra.mxu0 0
    %1112 = vmatprep.subr.bf16.mxu0 0
    %1113 = vmatpush1.bf16.msra.mxu0 0
    %1114 = vmatprep.subr.bf16.mxu0 0
    %1115 = vmatpush1.bf16.msra.mxu0 0
    %1116 = vmatprep.subr.bf16.mxu0 0
    %1117 = vmatpush1.bf16.msra.mxu0 0
    %1118 = vmatprep.subr.bf16.mxu0 0
    %1119 = vmatpush1.bf16.msra.mxu0 %v1102
    %1120 = vmatprep.subr.bf16.mxu0 0
    %1121 = vmatpush2.bf16.msra.mxu0 0
    %1122 = vmatprep.subr.bf16.mxu0 0
    %1123 = vmatpush2.bf16.msra.mxu0 0
    %1124 = vmatprep.subr.bf16.mxu0 0
    %1125 = vmatpush2.bf16.msra.mxu0 0
    %1126 = vmatprep.subr.bf16.mxu0 0
    %1127 = vmatpush2.bf16.msra.mxu0 0
    %1128 = vmatprep.subr.bf16.mxu0 0
    %1129 = vmatpush2.bf16.msra.mxu0 0
    %1130 = vmatprep.subr.bf16.mxu0 0
    %1131 = vmatpush2.bf16.msra.mxu0 0
    %1132 = vmatprep.subr.bf16.mxu0 0
    %1133 = vmatpush2.bf16.msra.mxu0 0
    %1134 = vmatprep.subr.bf16.mxu0 0
    %1135 = vmatpush2.bf16.msra.mxu0 0
    %1136 = vmatprep.mubr.bf16.mxu0 0
    %1137 = vmatmul.mubr.bf16.gmra.mxu0 %v1099
    %v1138 = vpop.f32.mrf.mxu0
    %v1139 = vadd.f32 0.0, %v1138
    %v1140 = vpop.f32.mrf.mxu0
    %v1141 = vpop.f32.mrf.mxu0
    %v1142 = vpop.f32.mrf.mxu0
    %1143 = vdwg.mxu0
    %1144 = vrot.lane.b32.xlu0 %v430, 112
    %v1145 = vpop.permute.xlu0 %1144
    %v1147 = vsel %vm431, %v1095, 0
    %v1150 = vsel %vm553, %v1145, 0
    %1152 = vmatprep.subr.bf16.mxu0 0
    %1153 = vmatpush1.bf16.msra.mxu0 0
    %1154 = vmatprep.subr.bf16.mxu0 0
    %1155 = vmatpush1.bf16.msra.mxu0 0
    %1156 = vmatprep.subr.bf16.mxu0 0
    %1157 = vmatpush1.bf16.msra.mxu0 0
    %1158 = vmatprep.subr.bf16.mxu0 0
    %1159 = vmatpush1.bf16.msra.mxu0 0
    %1160 = vmatprep.subr.bf16.mxu0 0
    %1161 = vmatpush1.bf16.msra.mxu0 0
    %1162 = vmatprep.subr.bf16.mxu0 0
    %1163 = vmatpush1.bf16.msra.mxu0 0
    %1164 = vmatprep.subr.bf16.mxu0 0
    %1165 = vmatpush1.bf16.msra.mxu0 0
    %1166 = vmatprep.subr.bf16.mxu0 0
    %1167 = vmatpush1.bf16.msra.mxu0 %v1150
    %1168 = vmatprep.subr.bf16.mxu0 0
    %1169 = vmatpush2.bf16.msra.mxu0 0
    %1170 = vmatprep.subr.bf16.mxu0 0
    %1171 = vmatpush2.bf16.msra.mxu0 0
    %1172 = vmatprep.subr.bf16.mxu0 0
    %1173 = vmatpush2.bf16.msra.mxu0 0
    %1174 = vmatprep.subr.bf16.mxu0 0
    %1175 = vmatpush2.bf16.msra.mxu0 0
    %1176 = vmatprep.subr.bf16.mxu0 0
    %1177 = vmatpush2.bf16.msra.mxu0 0
    %1178 = vmatprep.subr.bf16.mxu0 0
    %1179 = vmatpush2.bf16.msra.mxu0 0
    %1180 = vmatprep.subr.bf16.mxu0 0
    %1181 = vmatpush2.bf16.msra.mxu0 0
    %1182 = vmatprep.subr.bf16.mxu0 0
    %1183 = vmatpush2.bf16.msra.mxu0 0
    %1184 = vmatprep.mubr.bf16.mxu0 0
    %1185 = vmatmul.mubr.bf16.gmra.mxu0 %v1147
    %v1186 = vpop.f32.mrf.mxu0
    %v1187 = vadd.f32 0.0, %v1186
    %v1188 = vpop.f32.mrf.mxu0
    %v1189 = vpop.f32.mrf.mxu0
    %v1190 = vpop.f32.mrf.mxu0
    %1191 = vdwg.mxu0
    %v1192 = vpack.c.bf16 %v1187, %v1139
    %s1193 = scalar_lea.vmem %s13, 8
    %v1194 = vld [vmem:[%s1193] sm:$0xf]
    %v1196 = vsel %vm431, %v1192, 0
    %v1199 = vsel %vm553, %v1194, 0
    %1201 = vmatprep.subr.bf16.mxu0 0
    %1202 = vmatpush1.bf16.msra.mxu0 0
    %1203 = vmatprep.subr.bf16.mxu0 0
    %1204 = vmatpush1.bf16.msra.mxu0 0
    %1205 = vmatprep.subr.bf16.mxu0 0
    %1206 = vmatpush1.bf16.msra.mxu0 0
    %1207 = vmatprep.subr.bf16.mxu0 0
    %1208 = vmatpush1.bf16.msra.mxu0 0
    %1209 = vmatprep.subr.bf16.mxu0 0
    %1210 = vmatpush1.bf16.msra.mxu0 0
    %1211 = vmatprep.subr.bf16.mxu0 0
    %1212 = vmatpush1.bf16.msra.mxu0 0
    %1213 = vmatprep.subr.bf16.mxu0 0
    %1214 = vmatpush1.bf16.msra.mxu0 0
    %1215 = vmatprep.subr.bf16.mxu0 0
    %1216 = vmatpush1.bf16.msra.mxu0 %v1199
    %1217 = vmatprep.subr.bf16.mxu0 0
    %1218 = vmatpush2.bf16.msra.mxu0 0
    %1219 = vmatprep.subr.bf16.mxu0 0
    %1220 = vmatpush2.bf16.msra.mxu0 0
    %1221 = vmatprep.subr.bf16.mxu0 0
    %1222 = vmatpush2.bf16.msra.mxu0 0
    %1223 = vmatprep.subr.bf16.mxu0 0
    %1224 = vmatpush2.bf16.msra.mxu0 0
    %1225 = vmatprep.subr.bf16.mxu0 0
    %1226 = vmatpush2.bf16.msra.mxu0 0
    %1227 = vmatprep.subr.bf16.mxu0 0
    %1228 = vmatpush2.bf16.msra.mxu0 0
    %1229 = vmatprep.subr.bf16.mxu0 0
    %1230 = vmatpush2.bf16.msra.mxu0 0
    %1231 = vmatprep.subr.bf16.mxu0 0
    %1232 = vmatpush2.bf16.msra.mxu0 0
    %1233 = vmatprep.mubr.bf16.mxu0 0
    %1234 = vmatmul.mubr.bf16.gmra.mxu0 %v1196
    %v1235 = vpop.f32.mrf.mxu0
    %v1236 = vadd.f32 0.0, %v1235
    %v1237 = vpop.f32.mrf.mxu0
    %v1238 = vpop.f32.mrf.mxu0
    %v1239 = vadd.f32 0.0, %v1238
    %v1240 = vpop.f32.mrf.mxu0
    %1241 = vdwg.mxu0
    %v1242 = vadd.f32 %v964, %v1236
    %v1243 = vadd.f32 %v967, %v1239
    %1244 = vrot.lane.b32.xlu0 %v425, 104
    %v1245 = vpop.permute.xlu0 %1244
    %1246 = vrot.lane.b32.xlu0 %v427, 104
    %v1247 = vpop.permute.xlu0 %1246
    %v1249 = vsel %vm431, %v1245, 0
    %v1252 = vsel %vm431, %v1247, 0
    %1254 = vmatprep.subr.bf16.mxu0 0
    %1255 = vmatpush1.bf16.xpose.msra.mxu0 0
    %1256 = vmatprep.subr.bf16.mxu0 0
    %1257 = vmatpush1.bf16.xpose.msra.mxu0 0
    %1258 = vmatprep.subr.bf16.mxu0 0
    %1259 = vmatpush1.bf16.xpose.msra.mxu0 0
    %1260 = vmatprep.subr.bf16.mxu0 0
    %1261 = vmatpush1.bf16.xpose.msra.mxu0 0
    %1262 = vmatprep.subr.bf16.mxu0 0
    %1263 = vmatpush1.bf16.xpose.msra.mxu0 0
    %1264 = vmatprep.subr.bf16.mxu0 0
    %1265 = vmatpush1.bf16.xpose.msra.mxu0 0
    %1266 = vmatprep.subr.bf16.mxu0 0
    %1267 = vmatpush1.bf16.xpose.msra.mxu0 0
    %1268 = vmatprep.subr.bf16.mxu0 0
    %1269 = vmatpush1.bf16.xpose.msra.mxu0 %v1252
    %1270 = vmatprep.subr.bf16.mxu0 0
    %1271 = vmatpush2.bf16.xpose.msra.mxu0 0
    %1272 = vmatprep.subr.bf16.mxu0 0
    %1273 = vmatpush2.bf16.xpose.msra.mxu0 0
    %1274 = vmatprep.subr.bf16.mxu0 0
    %1275 = vmatpush2.bf16.xpose.msra.mxu0 0
    %1276 = vmatprep.subr.bf16.mxu0 0
    %1277 = vmatpush2.bf16.xpose.msra.mxu0 0
    %1278 = vmatprep.subr.bf16.mxu0 0
    %1279 = vmatpush2.bf16.xpose.msra.mxu0 0
    %1280 = vmatprep.subr.bf16.mxu0 0
    %1281 = vmatpush2.bf16.xpose.msra.mxu0 0
    %1282 = vmatprep.subr.bf16.mxu0 0
    %1283 = vmatpush2.bf16.xpose.msra.mxu0 0
    %1284 = vmatprep.subr.bf16.mxu0 0
    %1285 = vmatpush2.bf16.xpose.msra.mxu0 0
    %1286 = vmatprep.mubr.bf16.mxu0 0
    %1287 = vmatmul.mubr.bf16.gmra.mxu0 %v1249
    %v1288 = vpop.f32.mrf.mxu0
    %v1289 = vadd.f32 0.0, %v1288
    %v1290 = vpop.f32.mrf.mxu0
    %v1291 = vpop.f32.mrf.mxu0
    %v1292 = vpop.f32.mrf.mxu0
    %1293 = vdwg.mxu0
    %1294 = vrot.lane.b32.xlu0 %v426, 104
    %v1295 = vpop.permute.xlu0 %1294
    %1296 = vrot.lane.b32.xlu0 %v428, 104
    %v1297 = vpop.permute.xlu0 %1296
    %v1299 = vsel %vm431, %v1295, 0
    %v1302 = vsel %vm431, %v1297, 0
    %1304 = vmatprep.subr.bf16.mxu0 0
    %1305 = vmatpush1.bf16.xpose.msra.mxu0 0
    %1306 = vmatprep.subr.bf16.mxu0 0
    %1307 = vmatpush1.bf16.xpose.msra.mxu0 0
    %1308 = vmatprep.subr.bf16.mxu0 0
    %1309 = vmatpush1.bf16.xpose.msra.mxu0 0
    %1310 = vmatprep.subr.bf16.mxu0 0
    %1311 = vmatpush1.bf16.xpose.msra.mxu0 0
    %1312 = vmatprep.subr.bf16.mxu0 0
    %1313 = vmatpush1.bf16.xpose.msra.mxu0 0
    %1314 = vmatprep.subr.bf16.mxu0 0
    %1315 = vmatpush1.bf16.xpose.msra.mxu0 0
    %1316 = vmatprep.subr.bf16.mxu0 0
    %1317 = vmatpush1.bf16.xpose.msra.mxu0 0
    %1318 = vmatprep.subr.bf16.mxu0 0
    %1319 = vmatpush1.bf16.xpose.msra.mxu0 %v1302
    %1320 = vmatprep.subr.bf16.mxu0 0
    %1321 = vmatpush2.bf16.xpose.msra.mxu0 0
    %1322 = vmatprep.subr.bf16.mxu0 0
    %1323 = vmatpush2.bf16.xpose.msra.mxu0 0
    %1324 = vmatprep.subr.bf16.mxu0 0
    %1325 = vmatpush2.bf16.xpose.msra.mxu0 0
    %1326 = vmatprep.subr.bf16.mxu0 0
    %1327 = vmatpush2.bf16.xpose.msra.mxu0 0
    %1328 = vmatprep.subr.bf16.mxu0 0
    %1329 = vmatpush2.bf16.xpose.msra.mxu0 0
    %1330 = vmatprep.subr.bf16.mxu0 0
    %1331 = vmatpush2.bf16.xpose.msra.mxu0 0
    %1332 = vmatprep.subr.bf16.mxu0 0
    %1333 = vmatpush2.bf16.xpose.msra.mxu0 0
    %1334 = vmatprep.subr.bf16.mxu0 0
    %1335 = vmatpush2.bf16.xpose.msra.mxu0 0
    %1336 = vmatprep.mubr.bf16.mxu0 0
    %1337 = vmatmul.mubr.bf16.gmra.mxu0 %v1299
    %v1338 = vpop.f32.mrf.mxu0
    %v1339 = vadd.f32 0.0, %v1338
    %v1340 = vpop.f32.mrf.mxu0
    %v1341 = vpop.f32.mrf.mxu0
    %v1342 = vpop.f32.mrf.mxu0
    %1343 = vdwg.mxu0
    %v1344 = vmul.f32 %v1289, 0.35355338
    %v1345 = vmul.f32 %v1339, 0.35355338
    %v1346 = vsel %vm431, %v1344, -inf
    %1347 = vmax.xlane.f32.xlu0 %v1346
    %v1348 = vpop.xlane.xlu0 %1347
    %v1349 = vsel %vm431, %v1345, -inf
    %1350 = vmax.xlane.f32.xlu0 %v1349
    %v1351 = vpop.xlane.xlu0 %1350
    %v1352 = vsub.f32 %v1344, %v1348
    %v1353 = vsub.f32 %v1345, %v1351
    %v1354 = vmul.f32 %v1352, 1.442695
    %v1355 = vpow.pop %v1354
    %v1356 = vmul.f32 %v1353, 1.442695
    %v1357 = vpow.pop %v1356
    %v1358 = vsel %vm431, %v1355, 0.0
    %1359 = vadd.xlane.f32.xlu0 %v1358
    %v1360 = vpop.xlane.xlu0 %1359
    %v1361 = vsel %vm431, %v1357, 0.0
    %1362 = vadd.xlane.f32.xlu0 %v1361
    %v1363 = vpop.xlane.xlu0 %1362
    %v1364 = vrcp.pop %v1360
    %v1365 = vrcp.pop %v1363
    %v1366 = vmul.f32 %v1355, %v1364
    %v1367 = vmul.f32 %v1357, %v1365
    %v1368 = vpack.c.bf16 %v1366, %v1366
    %v1369 = vpack.c.bf16 %v1367, %v1367
    %1370 = vrot.lane.b32.xlu0 %v429, 104
    %v1371 = vpop.permute.xlu0 %1370
    %v1373 = vsel %vm431, %v1368, 0
    %v1376 = vsel %vm553, %v1371, 0
    %1378 = vmatprep.subr.bf16.mxu0 0
    %1379 = vmatpush1.bf16.msra.mxu0 0
    %1380 = vmatprep.subr.bf16.mxu0 0
    %1381 = vmatpush1.bf16.msra.mxu0 0
    %1382 = vmatprep.subr.bf16.mxu0 0
    %1383 = vmatpush1.bf16.msra.mxu0 0
    %1384 = vmatprep.subr.bf16.mxu0 0
    %1385 = vmatpush1.bf16.msra.mxu0 0
    %1386 = vmatprep.subr.bf16.mxu0 0
    %1387 = vmatpush1.bf16.msra.mxu0 0
    %1388 = vmatprep.subr.bf16.mxu0 0
    %1389 = vmatpush1.bf16.msra.mxu0 0
    %1390 = vmatprep.subr.bf16.mxu0 0
    %1391 = vmatpush1.bf16.msra.mxu0 0
    %1392 = vmatprep.subr.bf16.mxu0 0
    %1393 = vmatpush1.bf16.msra.mxu0 %v1376
    %1394 = vmatprep.subr.bf16.mxu0 0
    %1395 = vmatpush2.bf16.msra.mxu0 0
    %1396 = vmatprep.subr.bf16.mxu0 0
    %1397 = vmatpush2.bf16.msra.mxu0 0
    %1398 = vmatprep.subr.bf16.mxu0 0
    %1399 = vmatpush2.bf16.msra.mxu0 0
    %1400 = vmatprep.subr.bf16.mxu0 0
    %1401 = vmatpush2.bf16.msra.mxu0 0
    %1402 = vmatprep.subr.bf16.mxu0 0
    %1403 = vmatpush2.bf16.msra.mxu0 0
    %1404 = vmatprep.subr.bf16.mxu0 0
    %1405 = vmatpush2.bf16.msra.mxu0 0
    %1406 = vmatprep.subr.bf16.mxu0 0
    %1407 = vmatpush2.bf16.msra.mxu0 0
    %1408 = vmatprep.subr.bf16.mxu0 0
    %1409 = vmatpush2.bf16.msra.mxu0 0
    %1410 = vmatprep.mubr.bf16.mxu0 0
    %1411 = vmatmul.mubr.bf16.gmra.mxu0 %v1373
    %v1412 = vpop.f32.mrf.mxu0
    %v1413 = vadd.f32 0.0, %v1412
    %v1414 = vpop.f32.mrf.mxu0
    %v1415 = vpop.f32.mrf.mxu0
    %v1416 = vpop.f32.mrf.mxu0
    %1417 = vdwg.mxu0
    %1418 = vrot.lane.b32.xlu0 %v430, 104
    %v1419 = vpop.permute.xlu0 %1418
    %v1421 = vsel %vm431, %v1369, 0
    %v1424 = vsel %vm553, %v1419, 0
    %1426 = vmatprep.subr.bf16.mxu0 0
    %1427 = vmatpush1.bf16.msra.mxu0 0
    %1428 = vmatprep.subr.bf16.mxu0 0
    %1429 = vmatpush1.bf16.msra.mxu0 0
    %1430 = vmatprep.subr.bf16.mxu0 0
    %1431 = vmatpush1.bf16.msra.mxu0 0
    %1432 = vmatprep.subr.bf16.mxu0 0
    %1433 = vmatpush1.bf16.msra.mxu0 0
    %1434 = vmatprep.subr.bf16.mxu0 0
    %1435 = vmatpush1.bf16.msra.mxu0 0
    %1436 = vmatprep.subr.bf16.mxu0 0
    %1437 = vmatpush1.bf16.msra.mxu0 0
    %1438 = vmatprep.subr.bf16.mxu0 0
    %1439 = vmatpush1.bf16.msra.mxu0 0
    %1440 = vmatprep.subr.bf16.mxu0 0
    %1441 = vmatpush1.bf16.msra.mxu0 %v1424
    %1442 = vmatprep.subr.bf16.mxu0 0
    %1443 = vmatpush2.bf16.msra.mxu0 0
    %1444 = vmatprep.subr.bf16.mxu0 0
    %1445 = vmatpush2.bf16.msra.mxu0 0
    %1446 = vmatprep.subr.bf16.mxu0 0
    %1447 = vmatpush2.bf16.msra.mxu0 0
    %1448 = vmatprep.subr.bf16.mxu0 0
    %1449 = vmatpush2.bf16.msra.mxu0 0
    %1450 = vmatprep.subr.bf16.mxu0 0
    %1451 = vmatpush2.bf16.msra.mxu0 0
    %1452 = vmatprep.subr.bf16.mxu0 0
    %1453 = vmatpush2.bf16.msra.mxu0 0
    %1454 = vmatprep.subr.bf16.mxu0 0
    %1455 = vmatpush2.bf16.msra.mxu0 0
    %1456 = vmatprep.subr.bf16.mxu0 0
    %1457 = vmatpush2.bf16.msra.mxu0 0
    %1458 = vmatprep.mubr.bf16.mxu0 0
    %1459 = vmatmul.mubr.bf16.gmra.mxu0 %v1421
    %v1460 = vpop.f32.mrf.mxu0
    %v1461 = vadd.f32 0.0, %v1460
    %v1462 = vpop.f32.mrf.mxu0
    %v1463 = vpop.f32.mrf.mxu0
    %v1464 = vpop.f32.mrf.mxu0
    %1465 = vdwg.mxu0
    %v1466 = vpack.c.bf16 %v1461, %v1413
    %s1467 = scalar_lea.vmem %s13, 12
    %v1468 = vld [vmem:[%s1467] sm:$0xf]
    %v1470 = vsel %vm431, %v1466, 0
    %v1473 = vsel %vm553, %v1468, 0
    %1475 = vmatprep.subr.bf16.mxu0 0
    %1476 = vmatpush1.bf16.msra.mxu0 0
    %1477 = vmatprep.subr.bf16.mxu0 0
    %1478 = vmatpush1.bf16.msra.mxu0 0
    %1479 = vmatprep.subr.bf16.mxu0 0
    %1480 = vmatpush1.bf16.msra.mxu0 0
    %1481 = vmatprep.subr.bf16.mxu0 0
    %1482 = vmatpush1.bf16.msra.mxu0 0
    %1483 = vmatprep.subr.bf16.mxu0 0
    %1484 = vmatpush1.bf16.msra.mxu0 0
    %1485 = vmatprep.subr.bf16.mxu0 0
    %1486 = vmatpush1.bf16.msra.mxu0 0
    %1487 = vmatprep.subr.bf16.mxu0 0
    %1488 = vmatpush1.bf16.msra.mxu0 0
    %1489 = vmatprep.subr.bf16.mxu0 0
    %1490 = vmatpush1.bf16.msra.mxu0 %v1473
    %1491 = vmatprep.subr.bf16.mxu0 0
    %1492 = vmatpush2.bf16.msra.mxu0 0
    %1493 = vmatprep.subr.bf16.mxu0 0
    %1494 = vmatpush2.bf16.msra.mxu0 0
    %1495 = vmatprep.subr.bf16.mxu0 0
    %1496 = vmatpush2.bf16.msra.mxu0 0
    %1497 = vmatprep.subr.bf16.mxu0 0
    %1498 = vmatpush2.bf16.msra.mxu0 0
    %1499 = vmatprep.subr.bf16.mxu0 0
    %1500 = vmatpush2.bf16.msra.mxu0 0
    %1501 = vmatprep.subr.bf16.mxu0 0
    %1502 = vmatpush2.bf16.msra.mxu0 0
    %1503 = vmatprep.subr.bf16.mxu0 0
    %1504 = vmatpush2.bf16.msra.mxu0 0
    %1505 = vmatprep.subr.bf16.mxu0 0
    %1506 = vmatpush2.bf16.msra.mxu0 0
    %1507 = vmatprep.mubr.bf16.mxu0 0
    %1508 = vmatmul.mubr.bf16.gmra.mxu0 %v1470
    %v1509 = vpop.f32.mrf.mxu0
    %v1510 = vadd.f32 0.0, %v1509
    %v1511 = vpop.f32.mrf.mxu0
    %v1512 = vpop.f32.mrf.mxu0
    %v1513 = vadd.f32 0.0, %v1512
    %v1514 = vpop.f32.mrf.mxu0
    %1515 = vdwg.mxu0
    %v1516 = vadd.f32 %v1242, %v1510
    %v1517 = vadd.f32 %v1243, %v1513
    %v1518 = vld [vmem:[%s14] sm:$0x1]
    %v1520 = vlaneseq
    %v1521 = vshrl.u32 %v1520, 7
    %v1522 = vsub.s32 0, %v1521
    %v1523 = vrot.slane %v1518, %v1522
    %v1525 = vadd.f32 %v1516, %v1523
    %v1526 = vadd.f32 %v1517, %v1523
    %v1527 = vadd.f32 %v82, %v1525
    %v1528 = vadd.f32 %v83, %v1526
    %v1529 = vld [vmem:[%s15] sm:$0x1]
    %v1530 = vld [vmem:[%s16] sm:$0x1]
    %v1531 = vsel %vm112, %v1527, 0.0
    %1532 = vadd.xlane.f32.xlu0 %v1531
    %v1533 = vpop.xlane.xlu0 %1532
    %v1534 = vsel %vm112, %v1528, 0.0
    %1535 = vadd.xlane.f32.xlu0 %v1534
    %v1536 = vpop.xlane.xlu0 %1535
    %v1537 = vrcp.pop 32.0
    %v1538 = vmul.f32 %v1533, %v1537
    %v1539 = vmul.f32 %v1536, %v1537
    %v1540 = vsub.f32 %v1527, %v1538
    %v1541 = vsub.f32 %v1528, %v1539
    %v1542 = vmul.f32 %v1540, %v1540
    %v1543 = vmul.f32 %v1541, %v1541
    %v1544 = vsel %vm112, %v1542, 0.0
    %1545 = vadd.xlane.f32.xlu0 %v1544
    %v1546 = vpop.xlane.xlu0 %1545
    %v1547 = vsel %vm112, %v1543, 0.0
    %1548 = vadd.xlane.f32.xlu0 %v1547
    %v1549 = vpop.xlane.xlu0 %1548
    %v1550 = vmul.f32 %v1546, %v1537
    %v1551 = vmul.f32 %v1549, %v1537
    %v1552 = vadd.f32 %v1550, 1e-05
    %v1553 = vadd.f32 %v1551, 1e-05
    %v1554 = vrsqrt.pop %v1552
    %v1555 = vrsqrt.pop %v1553
    %v1556 = vmul.f32 %v1540, %v1554
    %v1557 = vmul.f32 %v1541, %v1555
    %v1559 = vlaneseq
    %v1560 = vshrl.u32 %v1559, 7
    %v1561 = vsub.s32 0, %v1560
    %v1562 = vrot.slane %v1529, %v1561
    %v1564 = vmul.f32 %v1556, %v1562
    %v1565 = vmul.f32 %v1557, %v1562
    %v1567 = vlaneseq
    %v1568 = vshrl.u32 %v1567, 7
    %v1569 = vsub.s32 0, %v1568
    %v1570 = vrot.slane %v1530, %v1569
    %v1572 = vadd.f32 %v1564, %v1570
    %v1573 = vadd.f32 %v1565, %v1570
    %v1574 = vpack.c.bf16 %v1573, %v1572
    %v1575 = vld [vmem:[%s17] sm:$0xf]
    %v1576 = vld [vmem:[%s17 + $0x4] sm:$0xf]
    %v1577 = vld [vmem:[%s17 + $0x8] sm:$0xf]
    %v1578 = vld [vmem:[%s17 + $0xc] sm:$0xf]
    %v1579 = vld [vmem:[%s18] sm:$0x1]
    %v1581 = vlaneseq
    %v1582 = vshrl.u32 %v1581, 7
    %v1583 = vsub.s32 0, %v1582
    %v1584 = vrot.slane %v1579, %v1583
    %v1590 = vunpack.c.l.b16 %v1575
    %v1591 = vunpack.c.l.b16 %v1576
    %v1592 = vunpack.c.l.b16 %v1577
    %v1593 = vunpack.c.l.b16 %v1578
    %v1594 = vpack.c.b16 %v1591, %v1590
    %v1595 = vpack.c.b16 %v1593, %v1592
    %v1599 = vsel %vm112, %v1574, 0
    %1601 = vmatprep.subr.bf16.mxu0 0
    %1602 = vmatpush1.bf16.msra.mxu0 0
    %1603 = vmatprep.subr.bf16.mxu0 0
    %1604 = vmatpush1.bf16.msra.mxu0 0
    %1605 = vmatprep.subr.bf16.mxu0 0
    %1606 = vmatpush1.bf16.msra.mxu0 0
    %1607 = vmatprep.subr.bf16.mxu0 0
    %1608 = vmatpush1.bf16.msra.mxu0 0
    %1609 = vmatprep.subr.bf16.mxu0 0
    %1610 = vmatpush1.bf16.msra.mxu0 0
    %1611 = vmatprep.subr.bf16.mxu0 0
    %1612 = vmatpush1.bf16.msra.mxu0 0
    %1613 = vmatprep.subr.bf16.mxu0 0
    %1614 = vmatpush1.bf16.msra.mxu0 %v1595
    %1615 = vmatprep.subr.bf16.mxu0 0
    %1616 = vmatpush1.bf16.msra.mxu0 %v1594
    %1617 = vmatprep.subr.bf16.mxu0 0
    %1618 = vmatpush2.bf16.msra.mxu0 0
    %1619 = vmatprep.subr.bf16.mxu0 0
    %1620 = vmatpush2.bf16.msra.mxu0 0
    %1621 = vmatprep.subr.bf16.mxu0 0
    %1622 = vmatpush2.bf16.msra.mxu0 0
    %1623 = vmatprep.subr.bf16.mxu0 0
    %1624 = vmatpush2.bf16.msra.mxu0 0
    %1625 = vmatprep.subr.bf16.mxu0 0
    %1626 = vmatpush2.bf16.msra.mxu0 0
    %1627 = vmatprep.subr.bf16.mxu0 0
    %1628 = vmatpush2.bf16.msra.mxu0 0
    %1629 = vmatprep.subr.bf16.mxu0 0
    %1630 = vmatpush2.bf16.msra.mxu0 0
    %1631 = vmatprep.subr.bf16.mxu0 0
    %1632 = vmatpush2.bf16.msra.mxu0 0
    %1633 = vmatprep.mubr.bf16.mxu0 0
    %1634 = vmatmul.mubr.bf16.gmra.mxu0 %v1599
    %v1635 = vpop.f32.mrf.mxu0
    %v1636 = vadd.f32 %v1584, %v1635
    %v1637 = vpop.f32.mrf.mxu0
    %v1638 = vpop.f32.mrf.mxu0
    %v1639 = vadd.f32 %v1584, %v1638
    %v1640 = vpop.f32.mrf.mxu0
    %1641 = vdwg.mxu0
    %v1642 = vxor.u32 %v1636, 2147483648
    %v1643 = vxor.u32 %v1639, 2147483648
    %v1644 = vmul.f32 %v1642, 1.442695
    %v1645 = vpow.pop %v1644
    %v1646 = vmul.f32 %v1643, 1.442695
    %v1647 = vpow.pop %v1646
    %v1648 = vadd.f32 %v1645, 1.0
    %v1649 = vadd.f32 %v1647, 1.0
    %v1650 = vrcp.pop %v1648
    %v1651 = vmul.f32 1.0, %v1650
    %v1652 = vrcp.pop %v1649
    %v1653 = vmul.f32 1.0, %v1652
    %v1654 = vmul.f32 %v1636, %v1651
    %v1655 = vmul.f32 %v1639, %v1653
    %v1656 = vld [vmem:[%s19] sm:$0xf]
    %v1657 = vld [vmem:[%s19 + $0x4] sm:$0xf]
    %v1658 = vld [vmem:[%s19 + $0x8] sm:$0xf]
    %v1659 = vld [vmem:[%s19 + $0xc] sm:$0xf]
    %v1660 = vld [vmem:[%s20] sm:$0x1]
    %v1662 = vlaneseq
    %v1663 = vshrl.u32 %v1662, 7
    %v1664 = vsub.s32 0, %v1663
    %v1665 = vrot.slane %v1660, %v1664
    %v1671 = vunpack.c.l.b16 %v1656
    %v1672 = vunpack.c.l.b16 %v1657
    %v1673 = vunpack.c.l.b16 %v1658
    %v1674 = vunpack.c.l.b16 %v1659
    %v1675 = vpack.c.b16 %v1672, %v1671
    %v1676 = vpack.c.b16 %v1674, %v1673
    %1679 = vmatprep.subr.bf16.mxu0 0
    %1680 = vmatpush1.bf16.msra.mxu0 0
    %1681 = vmatprep.subr.bf16.mxu0 0
    %1682 = vmatpush1.bf16.msra.mxu0 0
    %1683 = vmatprep.subr.bf16.mxu0 0
    %1684 = vmatpush1.bf16.msra.mxu0 0
    %1685 = vmatprep.subr.bf16.mxu0 0
    %1686 = vmatpush1.bf16.msra.mxu0 0
    %1687 = vmatprep.subr.bf16.mxu0 0
    %1688 = vmatpush1.bf16.msra.mxu0 0
    %1689 = vmatprep.subr.bf16.mxu0 0
    %1690 = vmatpush1.bf16.msra.mxu0 0
    %1691 = vmatprep.subr.bf16.mxu0 0
    %1692 = vmatpush1.bf16.msra.mxu0 %v1676
    %1693 = vmatprep.subr.bf16.mxu0 0
    %1694 = vmatpush1.bf16.msra.mxu0 %v1675
    %1695 = vmatprep.subr.bf16.mxu0 0
    %1696 = vmatpush2.bf16.msra.mxu0 0
    %1697 = vmatprep.subr.bf16.mxu0 0
    %1698 = vmatpush2.bf16.msra.mxu0 0
    %1699 = vmatprep.subr.bf16.mxu0 0
    %1700 = vmatpush2.bf16.msra.mxu0 0
    %1701 = vmatprep.subr.bf16.mxu0 0
    %1702 = vmatpush2.bf16.msra.mxu0 0
    %1703 = vmatprep.subr.bf16.mxu0 0
    %1704 = vmatpush2.bf16.msra.mxu0 0
    %1705 = vmatprep.subr.bf16.mxu0 0
    %1706 = vmatpush2.bf16.msra.mxu0 0
    %1707 = vmatprep.subr.bf16.mxu0 0
    %1708 = vmatpush2.bf16.msra.mxu0 0
    %1709 = vmatprep.subr.bf16.mxu0 0
    %1710 = vmatpush2.bf16.msra.mxu0 0
    %1711 = vmatprep.mubr.bf16.mxu0 0
    %1712 = vmatmul.mubr.bf16.gmra.mxu0 %v1599
    %v1713 = vpop.f32.mrf.mxu0
    %v1714 = vadd.f32 %v1665, %v1713
    %v1715 = vpop.f32.mrf.mxu0
    %v1716 = vpop.f32.mrf.mxu0
    %v1717 = vadd.f32 %v1665, %v1716
    %v1718 = vpop.f32.mrf.mxu0
    %1719 = vdwg.mxu0
    %v1720 = vmul.f32 %v1654, %v1714
    %v1721 = vmul.f32 %v1655, %v1717
    %v1722 = vpack.c.bf16 %v1721, %v1720
    %v1723 = vld [vmem:[%s21] sm:$0xf]
    %v1724 = vld [vmem:[%s21 + $0x4] sm:$0xf]
    %v1725 = vld [vmem:[%s21 + $0x8] sm:$0xf]
    %v1726 = vld [vmem:[%s21 + $0xc] sm:$0xf]
    %v1727 = vld [vmem:[%s21 + $0x10] sm:$0xf]
    %v1728 = vld [vmem:[%s21 + $0x14] sm:$0xf]
    %v1729 = vld [vmem:[%s21 + $0x18] sm:$0xf]
    %v1730 = vld [vmem:[%s21 + $0x1c] sm:$0xf]
    %v1731 = vld [vmem:[%s22] sm:$0x1]
    %v1733 = vlaneseq
    %v1734 = vshrl.u32 %v1733, 7
    %v1735 = vsub.s32 0, %v1734
    %v1736 = vrot.slane %v1731, %v1735
    %v1746 = vunpack.c.l.b16 %v1723
    %v1747 = vunpack.c.l.b16 %v1724
    %v1748 = vunpack.c.l.b16 %v1725
    %v1749 = vunpack.c.l.b16 %v1726
    %v1750 = vunpack.c.l.b16 %v1727
    %v1751 = vunpack.c.l.b16 %v1728
    %v1752 = vunpack.c.l.b16 %v1729
    %v1753 = vunpack.c.l.b16 %v1730
    %v1754 = vpack.c.b16 %v1747, %v1746
    %v1755 = vpack.c.b16 %v1749, %v1748
    %v1756 = vpack.c.b16 %v1751, %v1750
    %v1757 = vpack.c.b16 %v1753, %v1752
    %vm1762 = vcmask 523264
    %v1764 = vsel %vm1762, %v1722, 0
    %1766 = vmatprep.subr.bf16.mxu0 0
    %1767 = vmatpush1.bf16.msra.mxu0 0
    %1768 = vmatprep.subr.bf16.mxu0 0
    %1769 = vmatpush1.bf16.msra.mxu0 0
    %1770 = vmatprep.subr.bf16.mxu0 0
    %1771 = vmatpush1.bf16.msra.mxu0 0
    %1772 = vmatprep.subr.bf16.mxu0 0
    %1773 = vmatpush1.bf16.msra.mxu0 0
    %1774 = vmatprep.subr.bf16.mxu0 0
    %1775 = vmatpush1.bf16.msra.mxu0 %v1757
    %1776 = vmatprep.subr.bf16.mxu0 0
    %1777 = vmatpush1.bf16.msra.mxu0 %v1756
    %1778 = vmatprep.subr.bf16.mxu0 0
    %1779 = vmatpush1.bf16.msra.mxu0 %v1755
    %1780 = vmatprep.subr.bf16.mxu0 0
    %1781 = vmatpush1.bf16.msra.mxu0 %v1754
    %1782 = vmatprep.subr.bf16.mxu0 0
    %1783 = vmatpush2.bf16.msra.mxu0 0
    %1784 = vmatprep.subr.bf16.mxu0 0
    %1785 = vmatpush2.bf16.msra.mxu0 0
    %1786 = vmatprep.subr.bf16.mxu0 0
    %1787 = vmatpush2.bf16.msra.mxu0 0
    %1788 = vmatprep.subr.bf16.mxu0 0
    %1789 = vmatpush2.bf16.msra.mxu0 0
    %1790 = vmatprep.subr.bf16.mxu0 0
    %1791 = vmatpush2.bf16.msra.mxu0 0
    %1792 = vmatprep.subr.bf16.mxu0 0
    %1793 = vmatpush2.bf16.msra.mxu0 0
    %1794 = vmatprep.subr.bf16.mxu0 0
    %1795 = vmatpush2.bf16.msra.mxu0 0
    %1796 = vmatprep.subr.bf16.mxu0 0
    %1797 = vmatpush2.bf16.msra.mxu0 0
    %1798 = vmatprep.mubr.bf16.mxu0 0
    %1799 = vmatmul.mubr.bf16.gmra.mxu0 %v1764
    %v1800 = vpop.f32.mrf.mxu0
    %v1801 = vadd.f32 %v1736, %v1800
    %v1802 = vpop.f32.mrf.mxu0
    %v1803 = vpop.f32.mrf.mxu0
    %v1804 = vadd.f32 %v1736, %v1803
    %v1805 = vpop.f32.mrf.mxu0
    %1806 = vdwg.mxu0
    %v1807 = vadd.f32 %v1572, %v1801
    %v1808 = vadd.f32 %v1573, %v1804
    %v1809 = vld [vmem:[%s23] sm:$0x1]
    %v1810 = vld [vmem:[%s24] sm:$0x1]
    %v1811 = vsel %vm112, %v1807, 0.0
    %1812 = vadd.xlane.f32.xlu0 %v1811
    %v1813 = vpop.xlane.xlu0 %1812
    %v1814 = vsel %vm112, %v1808, 0.0
    %1815 = vadd.xlane.f32.xlu0 %v1814
    %v1816 = vpop.xlane.xlu0 %1815
    %v1817 = vmul.f32 %v1813, %v1537
    %v1818 = vmul.f32 %v1816, %v1537
    %v1819 = vsub.f32 %v1807, %v1817
    %v1820 = vsub.f32 %v1808, %v1818
    %v1821 = vmul.f32 %v1819, %v1819
    %v1822 = vmul.f32 %v1820, %v1820
    %v1823 = vsel %vm112, %v1821, 0.0
    %1824 = vadd.xlane.f32.xlu0 %v1823
    %v1825 = vpop.xlane.xlu0 %1824
    %v1826 = vsel %vm112, %v1822, 0.0
    %1827 = vadd.xlane.f32.xlu0 %v1826
    %v1828 = vpop.xlane.xlu0 %1827
    %v1829 = vmul.f32 %v1825, %v1537
    %v1830 = vmul.f32 %v1828, %v1537
    %v1831 = vadd.f32 %v1829, 1e-05
    %v1832 = vadd.f32 %v1830, 1e-05
    %v1833 = vrsqrt.pop %v1831
    %v1834 = vrsqrt.pop %v1832
    %v1835 = vmul.f32 %v1819, %v1833
    %v1836 = vmul.f32 %v1820, %v1834
    %v1838 = vlaneseq
    %v1839 = vshrl.u32 %v1838, 7
    %v1840 = vsub.s32 0, %v1839
    %v1841 = vrot.slane %v1809, %v1840
    %v1843 = vmul.f32 %v1835, %v1841
    %v1844 = vmul.f32 %v1836, %v1841
    %v1846 = vlaneseq
    %v1847 = vshrl.u32 %v1846, 7
    %v1848 = vsub.s32 0, %v1847
    %v1849 = vrot.slane %v1810, %v1848
    %v1851 = vadd.f32 %v1843, %v1849
    %v1852 = vadd.f32 %v1844, %v1849
    %1853 = vst.msk [vmem:[#allocation2] sm:$0xff] %vm112, %v1851
    %1854 = vst.msk [vmem:[#allocation2 + $0x8] sm:$0xff] %vm112, %v1852
    // Predicated region
    $region102: #{encoder_layer_forward.1} parent=1 // pred_check
      _
    $region103: #{encoder_layer_forward.1} parent=1 // pred_check_branch
      %1856 = sbr.rel (0) target = $region105
    $region104: #{encoder_layer_forward.1} parent=1 // pred_region
      %s1858 = ssub.s32 256, 256
      %1859 = vsyncadd [#allocation3], %s1858
      %s1860 = sshll.u32 [#allocation2], 4
      %s1861 = int_to_ptr.vmem [resolvable:$true] %s1860
      %1866 = dma.vmem_to_hbm [thread:$0]  %s1861, 256, %s25, [#allocation3], 128, 128, 8
    $region105: #{encoder_layer_forward.1} parent=1 // pred_fallthru
      _
    // Predicated region
    $region106: #{encoder_layer_forward.1} parent=1 // pred_check
      _
    $region107: #{encoder_layer_forward.1} parent=1 // pred_check_branch
      %1868 = sbr.rel (0) target = $region109
    $region108: #{encoder_layer_forward.1} parent=1 // pred_region
      %1869 = dma.done [#allocation3], 256
    $region109: #{encoder_layer_forward.1} parent=1 // pred_fallthru
      _
    %1870 = vsyncpa [#allocation3], 1

</llo_original>
